<compile_context>
chip_gen: v7x
topology: tpu7x:2x2x1
jax: 0.10.0
libtpu: 0.0.40
codegen_flags: <defaults>
</compile_context>

<pallas_src>
import math

import jax
import jax.numpy as jnp
from jax.experimental import pallas as pl
from jax.experimental.pallas import tpu as pltpu


def _round_up(x, m):
    return ((x + m - 1) // m) * m


def _full_spec(shape):
    # whole-array VMEM block, no grid -> index_map takes no args
    return pl.BlockSpec(shape, lambda: tuple(0 for _ in shape))


# ----------------------------------------------------------------------------
# Fused Pallas kernel: one full decode step
# ----------------------------------------------------------------------------

def decoder_step_kernel(ids_ref, h0_ref, c0_ref, wih_ref, whh_ref, b_ref, ob_ref,
                        emb_hbm, wo_hbm,
                        logp_ref, hout_ref, cout_ref,
                        x_buf, gsem, wo_buf, wo_sem):
    """Fused decode step.

    ids_ref : SMEM [B]            int32 token ids
    h0_ref  : VMEM [L, B, Hp]     f32   previous hidden states (lane padded)
    c0_ref  : VMEM [L, B, Hp]     f32   previous cell states   (lane padded)
    wih_ref : VMEM [L, Inp, 4Hp]  bf16  W_ih^T, gate-per-128-lane-group layout
    whh_ref : VMEM [L, Hp, 4Hp]   bf16  W_hh^T, same column layout
    b_ref   : VMEM [L, 1, 4Hp]    f32   b_ih + b_hh (padded gate lanes = 0)
    ob_ref  : VMEM [1, Vp]        f32   output bias (padded vocab cols = -1e30)
    emb_hbm : HBM  [V, E]         f32   embedding table (row-gathered by DMA)
    wo_hbm  : HBM  [Hp, Vp]       bf16  output projection (manually DMA'd)
    logp_ref: VMEM [B, Vp]        f32   log_softmax output (slice [:V] outside)
    hout_ref/cout_ref : VMEM [L, B, Hp] f32 (aliased onto h0/c0 HBM buffers)
    Gate order (PyTorch): i, f, g, o — each in its own Hp-lane group.
    """
    B, E = x_buf.shape
    L, _, Hp = h0_ref.shape

    # ---- 1) start the per-row embedding gather DMAs (critical path) --------
    gathers = []
    for i in range(B):
        row = ids_ref[i]
        cp = pltpu.make_async_copy(emb_hbm.at[pl.ds(row, 1), :],
                                   x_buf.at[pl.ds(i, 1), :],
                                   gsem.at[i])
        cp.start()
        gathers.append(cp)

    # ---- 2) start the output-projection weight DMA (needed only at the end,
    #         so it overlaps the gather + the whole LSTM stack) --------------
    wo_cp = pltpu.make_async_copy(wo_hbm, wo_buf, wo_sem.at[0])
    wo_cp.start()

    # ---- 3) embedding rows ready -> ReLU (embedding dropout = identity) ----
    for cp in gathers:
        cp.wait()
    x = jnp.maximum(x_buf[...], 0.0)                       # [B, E] f32

    # ---- 4) stacked LSTM layers (seq_len == 1) ------------------------------
    layer_in = x.astype(jnp.bfloat16)
    for l in range(L):
        h_prev = h0_ref[l]                                 # [B, Hp] f32
        c_prev = c0_ref[l]                                 # [B, Hp] f32
        in_rows = E if l == 0 else Hp
        w_i = wih_ref[l][:in_rows]                         # [in_rows, 4Hp] bf16

        gates = (jnp.dot(layer_in, w_i, preferred_element_type=jnp.float32)
                 + jnp.dot(h_prev.astype(jnp.bfloat16), whh_ref[l],
                           preferred_element_type=jnp.float32)
                 + b_ref[l])                               # [B, 4Hp] f32

        # whole-vreg sigmoid on the EUP; tanh only on the g group.
        sig = jax.nn.sigmoid(gates)
        i_g = sig[:, 0 * Hp:1 * Hp]
        f_g = sig[:, 1 * Hp:2 * Hp]
        o_g = sig[:, 3 * Hp:4 * Hp]
        g_g = jnp.tanh(gates[:, 2 * Hp:3 * Hp])

        # padded lanes: gates==0 -> i=f=o=0.5, g=0, c_prev=0 -> c_new=h_new=0
        c_new = f_g * c_prev + i_g * g_g
        h_new = o_g * jnp.tanh(c_new)

        hout_ref[l] = h_new                                # full-lane unmasked store
        cout_ref[l] = c_new
        layer_in = h_new.astype(jnp.bfloat16)              # inter-layer dropout = identity

    # ---- 5) output projection + log_softmax (lane-dense padded vocab) ------
    wo_cp.wait()
    logits = jnp.dot(layer_in, wo_buf[...],
                     preferred_element_type=jnp.float32) + ob_ref[...]   # [B, Vp]
    m = jnp.max(logits, axis=1, keepdims=True)
    z = logits - m
    lse = jnp.log(jnp.sum(jnp.exp(z), axis=1, keepdims=True))
    logp_ref[...] = z - lse


# ----------------------------------------------------------------------------
# Parameter construction (mimics module __init__; weights pre-packed for TPU)
# ----------------------------------------------------------------------------

def init_decoder_params(key, output_size, embedding_size, hidden_size, num_layers):
    V, E, H, L = output_size, embedding_size, hidden_size, num_layers
    Hp = _round_up(H, 128)                 # lane-dense state / gate width
    Vp = _round_up(V, 128)                 # lane-dense vocab
    Inp = max(E, Hp)

    keys = jax.random.split(key, 3 + 4 * L)
    k_iter = iter(keys)

    emb = jax.random.normal(next(k_iter), (V, E), jnp.float32)

    bound = 1.0 / math.sqrt(H)
    raw = {"embedding": emb, "w_ih": [], "w_hh": [], "b_ih": [], "b_hh": []}
    w_ih_p, w_hh_p, b_p = [], [], []
    for layer in range(L):
        in_sz = E if layer == 0 else H
        w_ih = jax.random.uniform(next(k_iter), (4 * H, in_sz), jnp.float32, -bound, bound)
        w_hh = jax.random.uniform(next(k_iter), (4 * H, H), jnp.float32, -bound, bound)
        b_ih = jax.random.uniform(next(k_iter), (4 * H,), jnp.float32, -bound, bound)
        b_hh = jax.random.uniform(next(k_iter), (4 * H,), jnp.float32, -bound, bound)
        raw["w_ih"].append(w_ih); raw["w_hh"].append(w_hh)
        raw["b_ih"].append(b_ih); raw["b_hh"].append(b_hh)

        # gate-per-128-lane-group layout: gate g (PyTorch order i,f,g,o) lives in
        # columns [g*Hp : g*Hp+H], the rest of the lane group is zero.
        wi = jnp.zeros((Inp, 4 * Hp), jnp.float32)
        wh = jnp.zeros((Hp, 4 * Hp), jnp.float32)
        bb = jnp.zeros((1, 4 * Hp), jnp.float32)
        for g in range(4):
            wi = wi.at[:in_sz, g * Hp:g * Hp + H].set(jnp.transpose(w_ih[g * H:(g + 1) * H, :]))
            wh = wh.at[:H, g * Hp:g * Hp + H].set(jnp.transpose(w_hh[g * H:(g + 1) * H, :]))
            bb = bb.at[0, g * Hp:g * Hp + H].set(b_ih[g * H:(g + 1) * H] + b_hh[g * H:(g + 1) * H])
        w_ih_p.append(wi); w_hh_p.append(wh); b_p.append(bb)

    # nn.Linear(hidden_size, output_size), lane-padded to (Hp, Vp)
    w_out = jax.random.uniform(next(k_iter), (V, H), jnp.float32, -bound, bound)
    b_out = jax.random.uniform(next(k_iter), (V,), jnp.float32, -bound, bound)
    raw["w_out"] = w_out; raw["b_out"] = b_out

    params = {
        "embedding": emb,                                            # [V, E] f32 (HBM)
        "w_ih": jnp.stack(w_ih_p).astype(jnp.bfloat16),              # [L, Inp, 4Hp]
        "w_hh": jnp.stack(w_hh_p).astype(jnp.bfloat16),              # [L, Hp, 4Hp]
        "lstm_b": jnp.stack(b_p),                                    # [L, 1, 4Hp] f32
        "out_w": (jnp.zeros((Hp, Vp), jnp.float32)
                  .at[:H, :V].set(jnp.transpose(w_out))).astype(jnp.bfloat16),  # [Hp, Vp]
        "out_b": jnp.full((1, Vp), -1e30, jnp.float32).at[0, :V].set(b_out),    # [1, Vp]
        "_raw": raw,                                                 # f32 reference copy
    }
    # NOTE: self.attention / self.concat are constructed in __init__ but never
    # used in forward(), so they carry no compute here.
    return params


# ----------------------------------------------------------------------------
# Forward pass (matches Decoder.forward semantics for one decode step)
# ----------------------------------------------------------------------------

def decoder_forward(params, inputs, hidden):
    """
    inputs : int32 [B]  token ids
    hidden : (h0, c0), each float32 [num_layers, B, hidden_size]
    returns: (log_probs [B, output_size], (h_new, c_new))
    """
    h0, c0 = hidden
    L, B, H = h0.shape
    V, E = params["embedding"].shape
    Hp = params["w_hh"].shape[1]
    Vp = params["out_w"].shape[1]

    ids = inputs.reshape(B).astype(jnp.int32)
    h0p = jnp.pad(h0, ((0, 0), (0, 0), (0, Hp - H)))
    c0p = jnp.pad(c0, ((0, 0), (0, 0), (0, Hp - H)))

    logp_pad, h_out, c_out = pl.pallas_call(
        decoder_step_kernel,
        out_shape=(jax.ShapeDtypeStruct((B, Vp), jnp.float32),
                   jax.ShapeDtypeStruct((L, B, Hp), jnp.float32),
                   jax.ShapeDtypeStruct((L, B, Hp), jnp.float32)),
        in_specs=[
            pl.BlockSpec(memory_space=pltpu.MemorySpace.SMEM),   # ids (scalars)
            _full_spec((L, B, Hp)),                              # h0 (padded)
            _full_spec((L, B, Hp)),                              # c0 (padded)
            _full_spec(params["w_ih"].shape),                    # W_ih^T stack
            _full_spec(params["w_hh"].shape),                    # W_hh^T stack
            _full_spec(params["lstm_b"].shape),                  # fused biases
            _full_spec(params["out_b"].shape),                   # output bias
            pl.BlockSpec(memory_space=pl.ANY),                   # embedding stays in HBM
            pl.BlockSpec(memory_space=pl.ANY),                   # out_w stays in HBM
        ],
        out_specs=(_full_spec((B, Vp)),
                   _full_spec((L, B, Hp)),
                   _full_spec((L, B, Hp))),
        scratch_shapes=[
            pltpu.VMEM((B, E), jnp.float32),        # gathered embedding rows
            pltpu.SemaphoreType.DMA((B,)),          # per-row gather semaphores
            pltpu.VMEM((Hp, Vp), jnp.bfloat16),     # staged output projection weight
            pltpu.SemaphoreType.DMA((1,)),          # out_w semaphore
        ],
        # in-place recurrent state update: h0 -> hout, c0 -> cout
        input_output_aliases={1: 1, 2: 2},
    )(ids, h0p, c0p, params["w_ih"], params["w_hh"], params["lstm_b"],
      params["out_b"], params["embedding"], params["out_w"])

    # drop lane padding (padded vocab columns carry ~zero probability;
    # padded state lanes are exactly zero)
    return logp_pad[:, :V], (h_out[:, :, :H], c_out[:, :, :H])


# ----------------------------------------------------------------------------
# Pure-JAX f32 reference (PyTorch semantics) for validation
# ----------------------------------------------------------------------------

def decoder_reference(params, inputs, hidden):
    raw = params["_raw"]
    h0, c0 = hidden
    L, _, H = h0.shape
    x = jnp.maximum(raw["embedding"][inputs], 0.0)
    hs, cs = [], []
    layer_in = x
    for l in range(L):
        gates = (layer_in @ raw["w_ih"][l].T + raw["b_ih"][l]
                 + h0[l] @ raw["w_hh"][l].T + raw["b_hh"][l])
        i_g = jax.nn.sigmoid(gates[:, 0 * H:1 * H])
        f_g = jax.nn.sigmoid(gates[:, 1 * H:2 * H])
        g_g = jnp.tanh(gates[:, 2 * H:3 * H])
        o_g = jax.nn.sigmoid(gates[:, 3 * H:4 * H])
        c = f_g * c0[l] + i_g * g_g
        h = o_g * jnp.tanh(c)
        hs.append(h); cs.append(c)
        layer_in = h
    logits = layer_in @ raw["w_out"].T + raw["b_out"]
    return jax.nn.log_softmax(logits, axis=-1), (jnp.stack(hs), jnp.stack(cs))


# ----------------------------------------------------------------------------
# Main
# ----------------------------------------------------------------------------

if __name__ == "__main__":
    config = {
        "hidden_size": 32,
        "num_layers": 2,
        "embedding_size": 32,
        "dropout": 0.1,
    }
    output_size = 16
    batch = 8

    key = jax.random.PRNGKey(0)
    k_param, k_inp, k_h, k_c = jax.random.split(key, 4)

    params = init_decoder_params(
        k_param, output_size, config["embedding_size"],
        config["hidden_size"], config["num_layers"])

    inputs = jax.random.randint(k_inp, (batch,), 0, output_size, dtype=jnp.int32)
    h0 = jax.random.normal(
        k_h, (config["num_layers"], batch, config["hidden_size"]), jnp.float32)
    c0 = jax.random.normal(
        k_c, (config["num_layers"], batch, config["hidden_size"]), jnp.float32)

    log_probs, (h_new, c_new) = decoder_forward(params, inputs, (h0, c0))
    jax.block_until_ready((log_probs, h_new, c_new))

    # shape / sanity checks
    assert log_probs.shape == (batch, output_size)
    assert h_new.shape == (config["num_layers"], batch, config["hidden_size"])
    assert c_new.shape == h_new.shape
    row_sums = jnp.sum(jnp.exp(log_probs), axis=1)
    assert bool(jnp.all(jnp.isfinite(log_probs)))
    assert bool(jnp.all(jnp.abs(row_sums - 1.0) < 1e-4))

    # numerical check vs pure-JAX f32 reference (kernel uses bf16 MXU operands,
    # so tolerances are intentionally loose)
    ref_lp, (ref_h, ref_c) = decoder_reference(params, inputs, (h0, c0))
    assert float(jnp.max(jnp.abs(log_probs - ref_lp))) < 1e-1
    assert float(jnp.max(jnp.abs(h_new - ref_h))) < 5e-2
    assert float(jnp.max(jnp.abs(c_new - ref_c))) < 5e-2

    print("KERNEL_OK")
</pallas_src>

<mosaic_0001>
module attributes {stable_mosaic.version = 11 : i64} {
  func.func @decoder_step_kernel(%arg0: memref<8xi32, #tpu.memory_space<smem>>, %arg1: memref<2x8x128xf32, #tpu.memory_space<vmem>>, %arg2: memref<2x8x128xf32, #tpu.memory_space<vmem>>, %arg3: memref<2x128x512xbf16, #tpu.memory_space<vmem>>, %arg4: memref<2x128x512xbf16, #tpu.memory_space<vmem>>, %arg5: memref<2x1x512xf32, #tpu.memory_space<vmem>>, %arg6: memref<1x128xf32, #tpu.memory_space<vmem>>, %arg7: memref<16x32xf32, #tpu.memory_space<any>>, %arg8: memref<128x128xbf16, #tpu.memory_space<any>>, %arg9: memref<8x128xf32, #tpu.memory_space<vmem>>, %arg10: memref<2x8x128xf32, #tpu.memory_space<vmem>>, %arg11: memref<2x8x128xf32, #tpu.memory_space<vmem>>, %arg12: memref<8x32xf32, #tpu.memory_space<vmem>>, %arg13: memref<8x!tpu.dma_semaphore, #tpu.memory_space<semaphore_mem>>, %arg14: memref<128x128xbf16, #tpu.memory_space<vmem>>, %arg15: memref<1x!tpu.dma_semaphore, #tpu.memory_space<semaphore_mem>>) attributes {dimension_semantics = [], scalar_prefetch = 0 : i64, scratch_operands = 4 : i64, tpu.core_type = #tpu.core_type<tc>} {
    %c0 = arith.constant 0 : index
    %0 = memref.load %arg0[%c0] : memref<8xi32, #tpu.memory_space<smem>>
    %c0_i32 = arith.constant 0 : i32
    %c0_i32_0 = arith.constant 0 : i32
    %1 = tpu.memref_slice %arg7[%0, %c0_i32_0] : memref<16x32xf32, #tpu.memory_space<any>> -> memref<1x32xf32, #tpu.memory_space<any>>
    %c0_i32_1 = arith.constant 0 : i32
    %c0_i32_2 = arith.constant 0 : i32
    %2 = tpu.memref_slice %arg12[%c0_i32_1, %c0_i32_2] : memref<8x32xf32, #tpu.memory_space<vmem>> -> memref<1x32xf32, #tpu.memory_space<vmem>>
    %3 = tpu.memref_slice %arg13[%c0_i32] : memref<8x!tpu.dma_semaphore, #tpu.memory_space<semaphore_mem>> -> memref<1x!tpu.dma_semaphore, #tpu.memory_space<semaphore_mem>>
    %4 = tpu.memref_squeeze %3 : memref<1x!tpu.dma_semaphore, #tpu.memory_space<semaphore_mem>> -> memref<!tpu.dma_semaphore, #tpu.memory_space<semaphore_mem>>
    tpu.enqueue_dma source(%1 : memref<1x32xf32, #tpu.memory_space<any>>) target(%2 : memref<1x32xf32, #tpu.memory_space<vmem>>) target_semaphore(%4 : memref<!tpu.dma_semaphore, #tpu.memory_space<semaphore_mem>>)
    %c1 = arith.constant 1 : index
    %5 = memref.load %arg0[%c1] : memref<8xi32, #tpu.memory_space<smem>>
    %c1_i32 = arith.constant 1 : i32
    %c0_i32_3 = arith.constant 0 : i32
    %6 = tpu.memref_slice %arg7[%5, %c0_i32_3] : memref<16x32xf32, #tpu.memory_space<any>> -> memref<1x32xf32, #tpu.memory_space<any>>
    %c1_i32_4 = arith.constant 1 : i32
    %c0_i32_5 = arith.constant 0 : i32
    %7 = tpu.memref_slice %arg12[%c1_i32_4, %c0_i32_5] : memref<8x32xf32, #tpu.memory_space<vmem>> -> memref<1x32xf32, #tpu.memory_space<vmem>>
    %8 = tpu.memref_slice %arg13[%c1_i32] : memref<8x!tpu.dma_semaphore, #tpu.memory_space<semaphore_mem>> -> memref<1x!tpu.dma_semaphore, #tpu.memory_space<semaphore_mem>>
    %9 = tpu.memref_squeeze %8 : memref<1x!tpu.dma_semaphore, #tpu.memory_space<semaphore_mem>> -> memref<!tpu.dma_semaphore, #tpu.memory_space<semaphore_mem>>
    tpu.enqueue_dma source(%6 : memref<1x32xf32, #tpu.memory_space<any>>) target(%7 : memref<1x32xf32, #tpu.memory_space<vmem>>) target_semaphore(%9 : memref<!tpu.dma_semaphore, #tpu.memory_space<semaphore_mem>>)
    %c2 = arith.constant 2 : index
    %10 = memref.load %arg0[%c2] : memref<8xi32, #tpu.memory_space<smem>>
    %c2_i32 = arith.constant 2 : i32
    %c0_i32_6 = arith.constant 0 : i32
    %11 = tpu.memref_slice %arg7[%10, %c0_i32_6] : memref<16x32xf32, #tpu.memory_space<any>> -> memref<1x32xf32, #tpu.memory_space<any>>
    %c2_i32_7 = arith.constant 2 : i32
    %c0_i32_8 = arith.constant 0 : i32
    %12 = tpu.memref_slice %arg12[%c2_i32_7, %c0_i32_8] : memref<8x32xf32, #tpu.memory_space<vmem>> -> memref<1x32xf32, #tpu.memory_space<vmem>>
    %13 = tpu.memref_slice %arg13[%c2_i32] : memref<8x!tpu.dma_semaphore, #tpu.memory_space<semaphore_mem>> -> memref<1x!tpu.dma_semaphore, #tpu.memory_space<semaphore_mem>>
    %14 = tpu.memref_squeeze %13 : memref<1x!tpu.dma_semaphore, #tpu.memory_space<semaphore_mem>> -> memref<!tpu.dma_semaphore, #tpu.memory_space<semaphore_mem>>
    tpu.enqueue_dma source(%11 : memref<1x32xf32, #tpu.memory_space<any>>) target(%12 : memref<1x32xf32, #tpu.memory_space<vmem>>) target_semaphore(%14 : memref<!tpu.dma_semaphore, #tpu.memory_space<semaphore_mem>>)
    %c3 = arith.constant 3 : index
    %15 = memref.load %arg0[%c3] : memref<8xi32, #tpu.memory_space<smem>>
    %c3_i32 = arith.constant 3 : i32
    %c0_i32_9 = arith.constant 0 : i32
    %16 = tpu.memref_slice %arg7[%15, %c0_i32_9] : memref<16x32xf32, #tpu.memory_space<any>> -> memref<1x32xf32, #tpu.memory_space<any>>
    %c3_i32_10 = arith.constant 3 : i32
    %c0_i32_11 = arith.constant 0 : i32
    %17 = tpu.memref_slice %arg12[%c3_i32_10, %c0_i32_11] : memref<8x32xf32, #tpu.memory_space<vmem>> -> memref<1x32xf32, #tpu.memory_space<vmem>>
    %18 = tpu.memref_slice %arg13[%c3_i32] : memref<8x!tpu.dma_semaphore, #tpu.memory_space<semaphore_mem>> -> memref<1x!tpu.dma_semaphore, #tpu.memory_space<semaphore_mem>>
    %19 = tpu.memref_squeeze %18 : memref<1x!tpu.dma_semaphore, #tpu.memory_space<semaphore_mem>> -> memref<!tpu.dma_semaphore, #tpu.memory_space<semaphore_mem>>
    tpu.enqueue_dma source(%16 : memref<1x32xf32, #tpu.memory_space<any>>) target(%17 : memref<1x32xf32, #tpu.memory_space<vmem>>) target_semaphore(%19 : memref<!tpu.dma_semaphore, #tpu.memory_space<semaphore_mem>>)
    %c4 = arith.constant 4 : index
    %20 = memref.load %arg0[%c4] : memref<8xi32, #tpu.memory_space<smem>>
    %c4_i32 = arith.constant 4 : i32
    %c0_i32_12 = arith.constant 0 : i32
    %21 = tpu.memref_slice %arg7[%20, %c0_i32_12] : memref<16x32xf32, #tpu.memory_space<any>> -> memref<1x32xf32, #tpu.memory_space<any>>
    %c4_i32_13 = arith.constant 4 : i32
    %c0_i32_14 = arith.constant 0 : i32
    %22 = tpu.memref_slice %arg12[%c4_i32_13, %c0_i32_14] : memref<8x32xf32, #tpu.memory_space<vmem>> -> memref<1x32xf32, #tpu.memory_space<vmem>>
    %23 = tpu.memref_slice %arg13[%c4_i32] : memref<8x!tpu.dma_semaphore, #tpu.memory_space<semaphore_mem>> -> memref<1x!tpu.dma_semaphore, #tpu.memory_space<semaphore_mem>>
    %24 = tpu.memref_squeeze %23 : memref<1x!tpu.dma_semaphore, #tpu.memory_space<semaphore_mem>> -> memref<!tpu.dma_semaphore, #tpu.memory_space<semaphore_mem>>
    tpu.enqueue_dma source(%21 : memref<1x32xf32, #tpu.memory_space<any>>) target(%22 : memref<1x32xf32, #tpu.memory_space<vmem>>) target_semaphore(%24 : memref<!tpu.dma_semaphore, #tpu.memory_space<semaphore_mem>>)
    %c5 = arith.constant 5 : index
    %25 = memref.load %arg0[%c5] : memref<8xi32, #tpu.memory_space<smem>>
    %c5_i32 = arith.constant 5 : i32
    %c0_i32_15 = arith.constant 0 : i32
    %26 = tpu.memref_slice %arg7[%25, %c0_i32_15] : memref<16x32xf32, #tpu.memory_space<any>> -> memref<1x32xf32, #tpu.memory_space<any>>
    %c5_i32_16 = arith.constant 5 : i32
    %c0_i32_17 = arith.constant 0 : i32
    %27 = tpu.memref_slice %arg12[%c5_i32_16, %c0_i32_17] : memref<8x32xf32, #tpu.memory_space<vmem>> -> memref<1x32xf32, #tpu.memory_space<vmem>>
    %28 = tpu.memref_slice %arg13[%c5_i32] : memref<8x!tpu.dma_semaphore, #tpu.memory_space<semaphore_mem>> -> memref<1x!tpu.dma_semaphore, #tpu.memory_space<semaphore_mem>>
    %29 = tpu.memref_squeeze %28 : memref<1x!tpu.dma_semaphore, #tpu.memory_space<semaphore_mem>> -> memref<!tpu.dma_semaphore, #tpu.memory_space<semaphore_mem>>
    tpu.enqueue_dma source(%26 : memref<1x32xf32, #tpu.memory_space<any>>) target(%27 : memref<1x32xf32, #tpu.memory_space<vmem>>) target_semaphore(%29 : memref<!tpu.dma_semaphore, #tpu.memory_space<semaphore_mem>>)
    %c6 = arith.constant 6 : index
    %30 = memref.load %arg0[%c6] : memref<8xi32, #tpu.memory_space<smem>>
    %c6_i32 = arith.constant 6 : i32
    %c0_i32_18 = arith.constant 0 : i32
    %31 = tpu.memref_slice %arg7[%30, %c0_i32_18] : memref<16x32xf32, #tpu.memory_space<any>> -> memref<1x32xf32, #tpu.memory_space<any>>
    %c6_i32_19 = arith.constant 6 : i32
    %c0_i32_20 = arith.constant 0 : i32
    %32 = tpu.memref_slice %arg12[%c6_i32_19, %c0_i32_20] : memref<8x32xf32, #tpu.memory_space<vmem>> -> memref<1x32xf32, #tpu.memory_space<vmem>>
    %33 = tpu.memref_slice %arg13[%c6_i32] : memref<8x!tpu.dma_semaphore, #tpu.memory_space<semaphore_mem>> -> memref<1x!tpu.dma_semaphore, #tpu.memory_space<semaphore_mem>>
    %34 = tpu.memref_squeeze %33 : memref<1x!tpu.dma_semaphore, #tpu.memory_space<semaphore_mem>> -> memref<!tpu.dma_semaphore, #tpu.memory_space<semaphore_mem>>
    tpu.enqueue_dma source(%31 : memref<1x32xf32, #tpu.memory_space<any>>) target(%32 : memref<1x32xf32, #tpu.memory_space<vmem>>) target_semaphore(%34 : memref<!tpu.dma_semaphore, #tpu.memory_space<semaphore_mem>>)
    %c7 = arith.constant 7 : index
    %35 = memref.load %arg0[%c7] : memref<8xi32, #tpu.memory_space<smem>>
    %c7_i32 = arith.constant 7 : i32
    %c0_i32_21 = arith.constant 0 : i32
    %36 = tpu.memref_slice %arg7[%35, %c0_i32_21] : memref<16x32xf32, #tpu.memory_space<any>> -> memref<1x32xf32, #tpu.memory_space<any>>
    %c7_i32_22 = arith.constant 7 : i32
    %c0_i32_23 = arith.constant 0 : i32
    %37 = tpu.memref_slice %arg12[%c7_i32_22, %c0_i32_23] : memref<8x32xf32, #tpu.memory_space<vmem>> -> memref<1x32xf32, #tpu.memory_space<vmem>>
    %38 = tpu.memref_slice %arg13[%c7_i32] : memref<8x!tpu.dma_semaphore, #tpu.memory_space<semaphore_mem>> -> memref<1x!tpu.dma_semaphore, #tpu.memory_space<semaphore_mem>>
    %39 = tpu.memref_squeeze %38 : memref<1x!tpu.dma_semaphore, #tpu.memory_space<semaphore_mem>> -> memref<!tpu.dma_semaphore, #tpu.memory_space<semaphore_mem>>
    tpu.enqueue_dma source(%36 : memref<1x32xf32, #tpu.memory_space<any>>) target(%37 : memref<1x32xf32, #tpu.memory_space<vmem>>) target_semaphore(%39 : memref<!tpu.dma_semaphore, #tpu.memory_space<semaphore_mem>>)
    %c0_i32_24 = arith.constant 0 : i32
    %40 = tpu.memref_slice %arg15[%c0_i32_24] : memref<1x!tpu.dma_semaphore, #tpu.memory_space<semaphore_mem>> -> memref<1x!tpu.dma_semaphore, #tpu.memory_space<semaphore_mem>>
    %41 = tpu.memref_squeeze %40 : memref<1x!tpu.dma_semaphore, #tpu.memory_space<semaphore_mem>> -> memref<!tpu.dma_semaphore, #tpu.memory_space<semaphore_mem>>
    tpu.enqueue_dma source(%arg8 : memref<128x128xbf16, #tpu.memory_space<any>>) target(%arg14 : memref<128x128xbf16, #tpu.memory_space<vmem>>) target_semaphore(%41 : memref<!tpu.dma_semaphore, #tpu.memory_space<semaphore_mem>>)
    %c0_i32_25 = arith.constant 0 : i32
    %c0_i32_26 = arith.constant 0 : i32
    %42 = tpu.memref_slice %arg7[%0, %c0_i32_26] : memref<16x32xf32, #tpu.memory_space<any>> -> memref<1x32xf32, #tpu.memory_space<any>>
    %c0_i32_27 = arith.constant 0 : i32
    %c0_i32_28 = arith.constant 0 : i32
    %43 = tpu.memref_slice %arg12[%c0_i32_27, %c0_i32_28] : memref<8x32xf32, #tpu.memory_space<vmem>> -> memref<1x32xf32, #tpu.memory_space<vmem>>
    %44 = tpu.memref_slice %arg13[%c0_i32_25] : memref<8x!tpu.dma_semaphore, #tpu.memory_space<semaphore_mem>> -> memref<1x!tpu.dma_semaphore, #tpu.memory_space<semaphore_mem>>
    %45 = tpu.memref_squeeze %44 : memref<1x!tpu.dma_semaphore, #tpu.memory_space<semaphore_mem>> -> memref<!tpu.dma_semaphore, #tpu.memory_space<semaphore_mem>>
    tpu.wait_dma2 semaphore(%45 : memref<!tpu.dma_semaphore, #tpu.memory_space<semaphore_mem>>) src(%42 : memref<1x32xf32, #tpu.memory_space<any>>) dst(%43 : memref<1x32xf32, #tpu.memory_space<vmem>>)
    %c1_i32_29 = arith.constant 1 : i32
    %c0_i32_30 = arith.constant 0 : i32
    %46 = tpu.memref_slice %arg7[%5, %c0_i32_30] : memref<16x32xf32, #tpu.memory_space<any>> -> memref<1x32xf32, #tpu.memory_space<any>>
    %c1_i32_31 = arith.constant 1 : i32
    %c0_i32_32 = arith.constant 0 : i32
    %47 = tpu.memref_slice %arg12[%c1_i32_31, %c0_i32_32] : memref<8x32xf32, #tpu.memory_space<vmem>> -> memref<1x32xf32, #tpu.memory_space<vmem>>
    %48 = tpu.memref_slice %arg13[%c1_i32_29] : memref<8x!tpu.dma_semaphore, #tpu.memory_space<semaphore_mem>> -> memref<1x!tpu.dma_semaphore, #tpu.memory_space<semaphore_mem>>
    %49 = tpu.memref_squeeze %48 : memref<1x!tpu.dma_semaphore, #tpu.memory_space<semaphore_mem>> -> memref<!tpu.dma_semaphore, #tpu.memory_space<semaphore_mem>>
    tpu.wait_dma2 semaphore(%49 : memref<!tpu.dma_semaphore, #tpu.memory_space<semaphore_mem>>) src(%46 : memref<1x32xf32, #tpu.memory_space<any>>) dst(%47 : memref<1x32xf32, #tpu.memory_space<vmem>>)
    %c2_i32_33 = arith.constant 2 : i32
    %c0_i32_34 = arith.constant 0 : i32
    %50 = tpu.memref_slice %arg7[%10, %c0_i32_34] : memref<16x32xf32, #tpu.memory_space<any>> -> memref<1x32xf32, #tpu.memory_space<any>>
    %c2_i32_35 = arith.constant 2 : i32
    %c0_i32_36 = arith.constant 0 : i32
    %51 = tpu.memref_slice %arg12[%c2_i32_35, %c0_i32_36] : memref<8x32xf32, #tpu.memory_space<vmem>> -> memref<1x32xf32, #tpu.memory_space<vmem>>
    %52 = tpu.memref_slice %arg13[%c2_i32_33] : memref<8x!tpu.dma_semaphore, #tpu.memory_space<semaphore_mem>> -> memref<1x!tpu.dma_semaphore, #tpu.memory_space<semaphore_mem>>
    %53 = tpu.memref_squeeze %52 : memref<1x!tpu.dma_semaphore, #tpu.memory_space<semaphore_mem>> -> memref<!tpu.dma_semaphore, #tpu.memory_space<semaphore_mem>>
    tpu.wait_dma2 semaphore(%53 : memref<!tpu.dma_semaphore, #tpu.memory_space<semaphore_mem>>) src(%50 : memref<1x32xf32, #tpu.memory_space<any>>) dst(%51 : memref<1x32xf32, #tpu.memory_space<vmem>>)
    %c3_i32_37 = arith.constant 3 : i32
    %c0_i32_38 = arith.constant 0 : i32
    %54 = tpu.memref_slice %arg7[%15, %c0_i32_38] : memref<16x32xf32, #tpu.memory_space<any>> -> memref<1x32xf32, #tpu.memory_space<any>>
    %c3_i32_39 = arith.constant 3 : i32
    %c0_i32_40 = arith.constant 0 : i32
    %55 = tpu.memref_slice %arg12[%c3_i32_39, %c0_i32_40] : memref<8x32xf32, #tpu.memory_space<vmem>> -> memref<1x32xf32, #tpu.memory_space<vmem>>
    %56 = tpu.memref_slice %arg13[%c3_i32_37] : memref<8x!tpu.dma_semaphore, #tpu.memory_space<semaphore_mem>> -> memref<1x!tpu.dma_semaphore, #tpu.memory_space<semaphore_mem>>
    %57 = tpu.memref_squeeze %56 : memref<1x!tpu.dma_semaphore, #tpu.memory_space<semaphore_mem>> -> memref<!tpu.dma_semaphore, #tpu.memory_space<semaphore_mem>>
    tpu.wait_dma2 semaphore(%57 : memref<!tpu.dma_semaphore, #tpu.memory_space<semaphore_mem>>) src(%54 : memref<1x32xf32, #tpu.memory_space<any>>) dst(%55 : memref<1x32xf32, #tpu.memory_space<vmem>>)
    %c4_i32_41 = arith.constant 4 : i32
    %c0_i32_42 = arith.constant 0 : i32
    %58 = tpu.memref_slice %arg7[%20, %c0_i32_42] : memref<16x32xf32, #tpu.memory_space<any>> -> memref<1x32xf32, #tpu.memory_space<any>>
    %c4_i32_43 = arith.constant 4 : i32
    %c0_i32_44 = arith.constant 0 : i32
    %59 = tpu.memref_slice %arg12[%c4_i32_43, %c0_i32_44] : memref<8x32xf32, #tpu.memory_space<vmem>> -> memref<1x32xf32, #tpu.memory_space<vmem>>
    %60 = tpu.memref_slice %arg13[%c4_i32_41] : memref<8x!tpu.dma_semaphore, #tpu.memory_space<semaphore_mem>> -> memref<1x!tpu.dma_semaphore, #tpu.memory_space<semaphore_mem>>
    %61 = tpu.memref_squeeze %60 : memref<1x!tpu.dma_semaphore, #tpu.memory_space<semaphore_mem>> -> memref<!tpu.dma_semaphore, #tpu.memory_space<semaphore_mem>>
    tpu.wait_dma2 semaphore(%61 : memref<!tpu.dma_semaphore, #tpu.memory_space<semaphore_mem>>) src(%58 : memref<1x32xf32, #tpu.memory_space<any>>) dst(%59 : memref<1x32xf32, #tpu.memory_space<vmem>>)
    %c5_i32_45 = arith.constant 5 : i32
    %c0_i32_46 = arith.constant 0 : i32
    %62 = tpu.memref_slice %arg7[%25, %c0_i32_46] : memref<16x32xf32, #tpu.memory_space<any>> -> memref<1x32xf32, #tpu.memory_space<any>>
    %c5_i32_47 = arith.constant 5 : i32
    %c0_i32_48 = arith.constant 0 : i32
    %63 = tpu.memref_slice %arg12[%c5_i32_47, %c0_i32_48] : memref<8x32xf32, #tpu.memory_space<vmem>> -> memref<1x32xf32, #tpu.memory_space<vmem>>
    %64 = tpu.memref_slice %arg13[%c5_i32_45] : memref<8x!tpu.dma_semaphore, #tpu.memory_space<semaphore_mem>> -> memref<1x!tpu.dma_semaphore, #tpu.memory_space<semaphore_mem>>
    %65 = tpu.memref_squeeze %64 : memref<1x!tpu.dma_semaphore, #tpu.memory_space<semaphore_mem>> -> memref<!tpu.dma_semaphore, #tpu.memory_space<semaphore_mem>>
    tpu.wait_dma2 semaphore(%65 : memref<!tpu.dma_semaphore, #tpu.memory_space<semaphore_mem>>) src(%62 : memref<1x32xf32, #tpu.memory_space<any>>) dst(%63 : memref<1x32xf32, #tpu.memory_space<vmem>>)
    %c6_i32_49 = arith.constant 6 : i32
    %c0_i32_50 = arith.constant 0 : i32
    %66 = tpu.memref_slice %arg7[%30, %c0_i32_50] : memref<16x32xf32, #tpu.memory_space<any>> -> memref<1x32xf32, #tpu.memory_space<any>>
    %c6_i32_51 = arith.constant 6 : i32
    %c0_i32_52 = arith.constant 0 : i32
    %67 = tpu.memref_slice %arg12[%c6_i32_51, %c0_i32_52] : memref<8x32xf32, #tpu.memory_space<vmem>> -> memref<1x32xf32, #tpu.memory_space<vmem>>
    %68 = tpu.memref_slice %arg13[%c6_i32_49] : memref<8x!tpu.dma_semaphore, #tpu.memory_space<semaphore_mem>> -> memref<1x!tpu.dma_semaphore, #tpu.memory_space<semaphore_mem>>
    %69 = tpu.memref_squeeze %68 : memref<1x!tpu.dma_semaphore, #tpu.memory_space<semaphore_mem>> -> memref<!tpu.dma_semaphore, #tpu.memory_space<semaphore_mem>>
    tpu.wait_dma2 semaphore(%69 : memref<!tpu.dma_semaphore, #tpu.memory_space<semaphore_mem>>) src(%66 : memref<1x32xf32, #tpu.memory_space<any>>) dst(%67 : memref<1x32xf32, #tpu.memory_space<vmem>>)
    %c7_i32_53 = arith.constant 7 : i32
    %c0_i32_54 = arith.constant 0 : i32
    %70 = tpu.memref_slice %arg7[%35, %c0_i32_54] : memref<16x32xf32, #tpu.memory_space<any>> -> memref<1x32xf32, #tpu.memory_space<any>>
    %c7_i32_55 = arith.constant 7 : i32
    %c0_i32_56 = arith.constant 0 : i32
    %71 = tpu.memref_slice %arg12[%c7_i32_55, %c0_i32_56] : memref<8x32xf32, #tpu.memory_space<vmem>> -> memref<1x32xf32, #tpu.memory_space<vmem>>
    %72 = tpu.memref_slice %arg13[%c7_i32_53] : memref<8x!tpu.dma_semaphore, #tpu.memory_space<semaphore_mem>> -> memref<1x!tpu.dma_semaphore, #tpu.memory_space<semaphore_mem>>
    %73 = tpu.memref_squeeze %72 : memref<1x!tpu.dma_semaphore, #tpu.memory_space<semaphore_mem>> -> memref<!tpu.dma_semaphore, #tpu.memory_space<semaphore_mem>>
    tpu.wait_dma2 semaphore(%73 : memref<!tpu.dma_semaphore, #tpu.memory_space<semaphore_mem>>) src(%70 : memref<1x32xf32, #tpu.memory_space<any>>) dst(%71 : memref<1x32xf32, #tpu.memory_space<vmem>>)
    %c0_57 = arith.constant 0 : index
    %c0_58 = arith.constant 0 : index
    %74 = vector.load %arg12[%c0_57, %c0_58] : memref<8x32xf32, #tpu.memory_space<vmem>>, vector<8x32xf32>
    %cst = arith.constant 0.000000e+00 : f32
    %75 = vector.broadcast %cst : f32 to vector<8x32xf32>
    %76 = arith.maximumf %74, %75 : vector<8x32xf32>
    %77 = arith.truncf %76 : vector<8x32xf32> to vector<8x32xbf16>
    %c0_59 = arith.constant 0 : index
    %c0_60 = arith.constant 0 : index
    %c0_61 = arith.constant 0 : index
    %78 = vector.load %arg1[%c0_59, %c0_60, %c0_61] : memref<2x8x128xf32, #tpu.memory_space<vmem>>, vector<1x8x128xf32>
    %79 = vector.shape_cast %78 : vector<1x8x128xf32> to vector<8x128xf32>
    %c0_62 = arith.constant 0 : index
    %c0_63 = arith.constant 0 : index
    %c0_64 = arith.constant 0 : index
    %80 = vector.load %arg2[%c0_62, %c0_63, %c0_64] : memref<2x8x128xf32, #tpu.memory_space<vmem>>, vector<1x8x128xf32>
    %81 = vector.shape_cast %80 : vector<1x8x128xf32> to vector<8x128xf32>
    %c0_65 = arith.constant 0 : index
    %c0_66 = arith.constant 0 : index
    %c0_67 = arith.constant 0 : index
    %82 = vector.load %arg3[%c0_65, %c0_66, %c0_67] : memref<2x128x512xbf16, #tpu.memory_space<vmem>>, vector<1x128x512xbf16>
    %83 = vector.shape_cast %82 : vector<1x128x512xbf16> to vector<128x512xbf16>
    %84 = vector.extract_strided_slice %83 {offsets = [0, 0], sizes = [32, 512], strides = [1, 1]} : vector<128x512xbf16> to vector<32x512xbf16>
    %cst_68 = arith.constant dense<0.000000e+00> : vector<8x512xf32>
    %85 = tpu.matmul %77, %84, %cst_68 {dimension_numbers = #tpu.dot_dimension_numbers<[1], [0], [0], [1], [0, 0, 1, 1], [], []>} : vector<8x32xbf16>, vector<32x512xbf16>, vector<8x512xf32> -> vector<8x512xf32>
    %86 = arith.truncf %79 : vector<8x128xf32> to vector<8x128xbf16>
    %c0_69 = arith.constant 0 : index
    %c0_70 = arith.constant 0 : index
    %c0_71 = arith.constant 0 : index
    %87 = vector.load %arg4[%c0_69, %c0_70, %c0_71] : memref<2x128x512xbf16, #tpu.memory_space<vmem>>, vector<1x128x512xbf16>
    %88 = vector.shape_cast %87 : vector<1x128x512xbf16> to vector<128x512xbf16>
    %cst_72 = arith.constant dense<0.000000e+00> : vector<8x512xf32>
    %89 = tpu.matmul %86, %88, %cst_72 {dimension_numbers = #tpu.dot_dimension_numbers<[1], [0], [0], [1], [0, 0, 1, 1], [], []>} : vector<8x128xbf16>, vector<128x512xbf16>, vector<8x512xf32> -> vector<8x512xf32>
    %90 = arith.addf %85, %89 : vector<8x512xf32>
    %c0_73 = arith.constant 0 : index
    %c0_74 = arith.constant 0 : index
    %c0_75 = arith.constant 0 : index
    %91 = vector.load %arg5[%c0_73, %c0_74, %c0_75] : memref<2x1x512xf32, #tpu.memory_space<vmem>>, vector<1x1x512xf32>
    %92 = vector.shape_cast %91 : vector<1x1x512xf32> to vector<1x512xf32>
    %93 = vector.broadcast %92 : vector<1x512xf32> to vector<8x512xf32>
    %94 = arith.addf %90, %93 : vector<8x512xf32>
    %95 = arith.negf %94 : vector<8x512xf32>
    %96 = math.exp %95 : vector<8x512xf32>
    %cst_76 = arith.constant 1.000000e+00 : f32
    %97 = vector.broadcast %cst_76 : f32 to vector<8x512xf32>
    %98 = arith.addf %97, %96 : vector<8x512xf32>
    %99 = arith.divf %97, %98 : vector<8x512xf32>
    %100 = vector.extract_strided_slice %99 {offsets = [0, 0], sizes = [8, 128], strides = [1, 1]} : vector<8x512xf32> to vector<8x128xf32>
    %101 = vector.extract_strided_slice %99 {offsets = [0, 128], sizes = [8, 128], strides = [1, 1]} : vector<8x512xf32> to vector<8x128xf32>
    %102 = vector.extract_strided_slice %99 {offsets = [0, 384], sizes = [8, 128], strides = [1, 1]} : vector<8x512xf32> to vector<8x128xf32>
    %103 = vector.extract_strided_slice %94 {offsets = [0, 256], sizes = [8, 128], strides = [1, 1]} : vector<8x512xf32> to vector<8x128xf32>
    %104 = math.tanh %103 : vector<8x128xf32>
    %105 = arith.mulf %101, %81 : vector<8x128xf32>
    %106 = arith.mulf %100, %104 : vector<8x128xf32>
    %107 = arith.addf %105, %106 : vector<8x128xf32>
    %108 = math.tanh %107 : vector<8x128xf32>
    %109 = arith.mulf %102, %108 : vector<8x128xf32>
    %c0_77 = arith.constant 0 : index
    %c0_78 = arith.constant 0 : index
    %c0_79 = arith.constant 0 : index
    %110 = vector.load %arg10[%c0_77, %c0_78, %c0_79] : memref<2x8x128xf32, #tpu.memory_space<vmem>>, vector<1x8x128xf32>
    %111 = vector.shape_cast %110 : vector<1x8x128xf32> to vector<8x128xf32>
    %112 = vector.shape_cast %109 : vector<8x128xf32> to vector<1x8x128xf32>
    tpu.vector_store %arg10[%c0_77, %c0_78, %c0_79], %112 {strides = array<i32>} : memref<2x8x128xf32, #tpu.memory_space<vmem>>, vector<1x8x128xf32>,
    %c0_80 = arith.constant 0 : index
    %c0_81 = arith.constant 0 : index
    %c0_82 = arith.constant 0 : index
    %113 = vector.load %arg11[%c0_80, %c0_81, %c0_82] : memref<2x8x128xf32, #tpu.memory_space<vmem>>, vector<1x8x128xf32>
    %114 = vector.shape_cast %113 : vector<1x8x128xf32> to vector<8x128xf32>
    %115 = vector.shape_cast %107 : vector<8x128xf32> to vector<1x8x128xf32>
    tpu.vector_store %arg11[%c0_80, %c0_81, %c0_82], %115 {strides = array<i32>} : memref<2x8x128xf32, #tpu.memory_space<vmem>>, vector<1x8x128xf32>,
    %116 = arith.truncf %109 : vector<8x128xf32> to vector<8x128xbf16>
    %c1_83 = arith.constant 1 : index
    %c0_84 = arith.constant 0 : index
    %c0_85 = arith.constant 0 : index
    %117 = vector.load %arg1[%c1_83, %c0_84, %c0_85] : memref<2x8x128xf32, #tpu.memory_space<vmem>>, vector<1x8x128xf32>
    %118 = vector.shape_cast %117 : vector<1x8x128xf32> to vector<8x128xf32>
    %c1_86 = arith.constant 1 : index
    %c0_87 = arith.constant 0 : index
    %c0_88 = arith.constant 0 : index
    %119 = vector.load %arg2[%c1_86, %c0_87, %c0_88] : memref<2x8x128xf32, #tpu.memory_space<vmem>>, vector<1x8x128xf32>
    %120 = vector.shape_cast %119 : vector<1x8x128xf32> to vector<8x128xf32>
    %c1_89 = arith.constant 1 : index
    %c0_90 = arith.constant 0 : index
    %c0_91 = arith.constant 0 : index
    %121 = vector.load %arg3[%c1_89, %c0_90, %c0_91] : memref<2x128x512xbf16, #tpu.memory_space<vmem>>, vector<1x128x512xbf16>
    %122 = vector.shape_cast %121 : vector<1x128x512xbf16> to vector<128x512xbf16>
    %cst_92 = arith.constant dense<0.000000e+00> : vector<8x512xf32>
    %123 = tpu.matmul %116, %122, %cst_92 {dimension_numbers = #tpu.dot_dimension_numbers<[1], [0], [0], [1], [0, 0, 1, 1], [], []>} : vector<8x128xbf16>, vector<128x512xbf16>, vector<8x512xf32> -> vector<8x512xf32>
    %124 = arith.truncf %118 : vector<8x128xf32> to vector<8x128xbf16>
    %c1_93 = arith.constant 1 : index
    %c0_94 = arith.constant 0 : index
    %c0_95 = arith.constant 0 : index
    %125 = vector.load %arg4[%c1_93, %c0_94, %c0_95] : memref<2x128x512xbf16, #tpu.memory_space<vmem>>, vector<1x128x512xbf16>
    %126 = vector.shape_cast %125 : vector<1x128x512xbf16> to vector<128x512xbf16>
    %cst_96 = arith.constant dense<0.000000e+00> : vector<8x512xf32>
    %127 = tpu.matmul %124, %126, %cst_96 {dimension_numbers = #tpu.dot_dimension_numbers<[1], [0], [0], [1], [0, 0, 1, 1], [], []>} : vector<8x128xbf16>, vector<128x512xbf16>, vector<8x512xf32> -> vector<8x512xf32>
    %128 = arith.addf %123, %127 : vector<8x512xf32>
    %c1_97 = arith.constant 1 : index
    %c0_98 = arith.constant 0 : index
    %c0_99 = arith.constant 0 : index
    %129 = vector.load %arg5[%c1_97, %c0_98, %c0_99] : memref<2x1x512xf32, #tpu.memory_space<vmem>>, vector<1x1x512xf32>
    %130 = vector.shape_cast %129 : vector<1x1x512xf32> to vector<1x512xf32>
    %131 = vector.broadcast %130 : vector<1x512xf32> to vector<8x512xf32>
    %132 = arith.addf %128, %131 : vector<8x512xf32>
    %133 = arith.negf %132 : vector<8x512xf32>
    %134 = math.exp %133 : vector<8x512xf32>
    %cst_100 = arith.constant 1.000000e+00 : f32
    %135 = vector.broadcast %cst_100 : f32 to vector<8x512xf32>
    %136 = arith.addf %135, %134 : vector<8x512xf32>
    %137 = arith.divf %135, %136 : vector<8x512xf32>
    %138 = vector.extract_strided_slice %137 {offsets = [0, 0], sizes = [8, 128], strides = [1, 1]} : vector<8x512xf32> to vector<8x128xf32>
    %139 = vector.extract_strided_slice %137 {offsets = [0, 128], sizes = [8, 128], strides = [1, 1]} : vector<8x512xf32> to vector<8x128xf32>
    %140 = vector.extract_strided_slice %137 {offsets = [0, 384], sizes = [8, 128], strides = [1, 1]} : vector<8x512xf32> to vector<8x128xf32>
    %141 = vector.extract_strided_slice %132 {offsets = [0, 256], sizes = [8, 128], strides = [1, 1]} : vector<8x512xf32> to vector<8x128xf32>
    %142 = math.tanh %141 : vector<8x128xf32>
    %143 = arith.mulf %139, %120 : vector<8x128xf32>
    %144 = arith.mulf %138, %142 : vector<8x128xf32>
    %145 = arith.addf %143, %144 : vector<8x128xf32>
    %146 = math.tanh %145 : vector<8x128xf32>
    %147 = arith.mulf %140, %146 : vector<8x128xf32>
    %c1_101 = arith.constant 1 : index
    %c0_102 = arith.constant 0 : index
    %c0_103 = arith.constant 0 : index
    %148 = vector.load %arg10[%c1_101, %c0_102, %c0_103] : memref<2x8x128xf32, #tpu.memory_space<vmem>>, vector<1x8x128xf32>
    %149 = vector.shape_cast %148 : vector<1x8x128xf32> to vector<8x128xf32>
    %150 = vector.shape_cast %147 : vector<8x128xf32> to vector<1x8x128xf32>
    tpu.vector_store %arg10[%c1_101, %c0_102, %c0_103], %150 {strides = array<i32>} : memref<2x8x128xf32, #tpu.memory_space<vmem>>, vector<1x8x128xf32>,
    %c1_104 = arith.constant 1 : index
    %c0_105 = arith.constant 0 : index
    %c0_106 = arith.constant 0 : index
    %151 = vector.load %arg11[%c1_104, %c0_105, %c0_106] : memref<2x8x128xf32, #tpu.memory_space<vmem>>, vector<1x8x128xf32>
    %152 = vector.shape_cast %151 : vector<1x8x128xf32> to vector<8x128xf32>
    %153 = vector.shape_cast %145 : vector<8x128xf32> to vector<1x8x128xf32>
    tpu.vector_store %arg11[%c1_104, %c0_105, %c0_106], %153 {strides = array<i32>} : memref<2x8x128xf32, #tpu.memory_space<vmem>>, vector<1x8x128xf32>,
    %154 = arith.truncf %147 : vector<8x128xf32> to vector<8x128xbf16>
    %c0_i32_107 = arith.constant 0 : i32
    %155 = tpu.memref_slice %arg15[%c0_i32_107] : memref<1x!tpu.dma_semaphore, #tpu.memory_space<semaphore_mem>> -> memref<1x!tpu.dma_semaphore, #tpu.memory_space<semaphore_mem>>
    %156 = tpu.memref_squeeze %155 : memref<1x!tpu.dma_semaphore, #tpu.memory_space<semaphore_mem>> -> memref<!tpu.dma_semaphore, #tpu.memory_space<semaphore_mem>>
    tpu.wait_dma2 semaphore(%156 : memref<!tpu.dma_semaphore, #tpu.memory_space<semaphore_mem>>) src(%arg8 : memref<128x128xbf16, #tpu.memory_space<any>>) dst(%arg14 : memref<128x128xbf16, #tpu.memory_space<vmem>>)
    %c0_108 = arith.constant 0 : index
    %c0_109 = arith.constant 0 : index
    %157 = vector.load %arg14[%c0_108, %c0_109] : memref<128x128xbf16, #tpu.memory_space<vmem>>, vector<128x128xbf16>
    %cst_110 = arith.constant dense<0.000000e+00> : vector<8x128xf32>
    %158 = tpu.matmul %154, %157, %cst_110 {dimension_numbers = #tpu.dot_dimension_numbers<[1], [0], [0], [1], [0, 0, 1, 1], [], []>} : vector<8x128xbf16>, vector<128x128xbf16>, vector<8x128xf32> -> vector<8x128xf32>
    %c0_111 = arith.constant 0 : index
    %c0_112 = arith.constant 0 : index
    %159 = vector.load %arg6[%c0_111, %c0_112] : memref<1x128xf32, #tpu.memory_space<vmem>>, vector<1x128xf32>
    %160 = vector.broadcast %159 : vector<1x128xf32> to vector<8x128xf32>
    %161 = arith.addf %158, %160 : vector<8x128xf32>
    %cst_113 = arith.constant dense<0xFF800000> : vector<8xf32>
    %162 = vector.multi_reduction <maximumf>, %161, %cst_113 [1] : vector<8x128xf32> to vector<8xf32>
    %163 = vector.shape_cast %162 : vector<8xf32> to vector<8x1xf32>
    %164 = vector.broadcast %163 : vector<8x1xf32> to vector<8x128xf32>
    %165 = arith.subf %161, %164 : vector<8x128xf32>
    %166 = math.exp %165 : vector<8x128xf32>
    %cst_114 = arith.constant dense<0.000000e+00> : vector<8xf32>
    %167 = vector.multi_reduction <add>, %166, %cst_114 [1] : vector<8x128xf32> to vector<8xf32>
    %168 = vector.shape_cast %167 : vector<8xf32> to vector<8x1xf32>
    %169 = math.log %168 : vector<8x1xf32>
    %170 = vector.broadcast %169 : vector<8x1xf32> to vector<8x128xf32>
    %171 = arith.subf %165, %170 : vector<8x128xf32>
    %c0_115 = arith.constant 0 : index
    %c0_116 = arith.constant 0 : index
    %172 = vector.load %arg9[%c0_115, %c0_116] : memref<8x128xf32, #tpu.memory_space<vmem>>, vector<8x128xf32>
    tpu.vector_store %arg9[%c0_115, %c0_116], %171 {strides = array<i32>} : memref<8x128xf32, #tpu.memory_space<vmem>>, vector<8x128xf32>,
    return
  }
}

</mosaic_0001>

<llo_original>
// kernel: tpu_custom_call.1
$region0: #{tpu_custom_call.1}
  #allocation0 [shape = 'u32[]', space=smem, size = 0x4, offset = 0x4, fixed_abs, tag = 'smem constant byte address 0x4 - core index']
  #allocation1 [shape = 'u32[144,128]{1,0:T(1,128)}', space=vmem, size = 0x12000, scoped, tag = 'internal scratch']
  #allocation2 [shape = 'f32[8,32]{1,0:T(8,128)}', space=vmem, size = 0x1000, scoped, tag = 'scratch operand']
  #allocation3 [shape = 's32[8]{0}', space=sflag, size = 0x20, scoped, tag = 'scratch operand']
  #allocation4 [shape = 'bf16[128,128]{1,0:T(16,128)(2,1)}', space=vmem, size = 0x8000, scoped, tag = 'scratch operand']
  #allocation5 [shape = 's32[1]{0}', space=sflag, size = 0x4, scoped, tag = 'scratch operand']
  #allocation21 [shape = 's32[]', space=sflag, size = 0x4, offset = 0, fixed_abs, tag = 'sflag constant byte address 0x0 - dummy sync flag']
  #allocation22 [shape = 's32[]', space=sflag, size = 0x4, offset = 0, fixed_abs, tag = 'sflag constant byte address 0x0 - dummy sync flag']
  #allocation23 [shape = 'u32[]', space=smem, size = 0x4, offset = 0x44, fixed_abs, tag = 'smem constant byte address 0x44 - assertion arg 0']
  #allocation24 [shape = 'u32[]', space=smem, size = 0x4, offset = 0x48, fixed_abs, tag = 'smem constant byte address 0x48 - assertion arg 1']
  #allocation25 [shape = 's32[]', space=sflag, size = 0x4, offset = 0, fixed_abs, tag = 'sflag constant byte address 0x0 - dummy sync flag']
  #allocation26 [shape = 's32[]', space=sflag, size = 0x4, offset = 0, fixed_abs, tag = 'sflag constant byte address 0x0 - dummy sync flag']
  #allocation27 [shape = 's32[]', space=sflag, size = 0x4, offset = 0, fixed_abs, tag = 'sflag constant byte address 0x0 - dummy sync flag']
  #allocation28 [shape = 's32[]', space=sflag, size = 0x4, offset = 0, fixed_abs, tag = 'sflag constant byte address 0x0 - dummy sync flag']
  #allocation29 [shape = 's32[]', space=sflag, size = 0x4, offset = 0, fixed_abs, tag = 'sflag constant byte address 0x0 - dummy sync flag']
  #allocation30 [shape = 's32[]', space=sflag, size = 0x4, offset = 0, fixed_abs, tag = 'sflag constant byte address 0x0 - dummy sync flag']
  #allocation31 [shape = 's32[]', space=sflag, size = 0x4, offset = 0, fixed_abs, tag = 'sflag constant byte address 0x0 - dummy sync flag']
  #allocation32 [shape = 's32[]', space=sflag, size = 0x4, offset = 0, fixed_abs, tag = 'sflag constant byte address 0x0 - dummy sync flag']
  #allocation33 [shape = 's32[]', space=sflag, size = 0x4, offset = 0, fixed_abs, tag = 'sflag constant byte address 0x0 - dummy sync flag']
  #allocation34 [shape = 's32[]', space=sflag, size = 0x4, offset = 0, fixed_abs, tag = 'sflag constant byte address 0x0 - dummy sync flag']
  #allocation35 [shape = 's32[]', space=sflag, size = 0x4, offset = 0, fixed_abs, tag = 'sflag constant byte address 0x0 - dummy sync flag']
  #allocation36 [shape = 's32[]', space=sflag, size = 0x4, offset = 0, fixed_abs, tag = 'sflag constant byte address 0x0 - dummy sync flag']
  #allocation37 [shape = 's32[]', space=sflag, size = 0x4, offset = 0, fixed_abs, tag = 'sflag constant byte address 0x0 - dummy sync flag']
  #allocation38 [shape = 's32[]', space=sflag, size = 0x4, offset = 0, fixed_abs, tag = 'sflag constant byte address 0x0 - dummy sync flag']
  #allocation39 [shape = 's32[]', space=sflag, size = 0x4, offset = 0, fixed_abs, tag = 'sflag constant byte address 0x0 - dummy sync flag']
  %s0 = inlined_call_operand.vmem [shape: s32[8], index: 0, kind: input, shape index: {}]
  %s1 = inlined_call_operand.hbm [shape: f32[2,8,128], index: 1, kind: input, shape index: {}, may-alias: {1,10}]
  %s2 = inlined_call_operand.hbm [shape: f32[2,8,128], index: 2, kind: input, shape index: {}, may-alias: {2,11}]
  %s3 = inlined_call_operand.hbm [shape: bf16[2,128,512], index: 3, kind: input, shape index: {}]
  %s4 = inlined_call_operand.hbm [shape: bf16[2,128,512], index: 4, kind: input, shape index: {}]
  %s5 = inlined_call_operand.hbm [shape: f32[2,1,512], index: 5, kind: input, shape index: {}]
  %s6 = inlined_call_operand.vmem [shape: f32[1,128], index: 6, kind: input, shape index: {}]
  %s7 = inlined_call_operand.hbm [shape: f32[16,32], index: 7, kind: input, shape index: {}]
  %s8 = inlined_call_operand.vmem [shape: bf16[128,128], index: 8, kind: input, shape index: {}]
  %s9 = inlined_call_operand.hbm [shape: f32[8,128], index: 9, kind: output, shape index: {0}]
  %s10 = inlined_call_operand.hbm [shape: f32[2,8,128], index: 10, kind: output, shape index: {1}, may-alias: {1,10}]
  %s11 = inlined_call_operand.hbm [shape: f32[2,8,128], index: 11, kind: output, shape index: {2}, may-alias: {2,11}]
  %12 = xla_tuple %s9, %s10, %s11
  %s13 = sld [smem:[#allocation0]]
  $region144: #{tpu_custom_call.1} parent=0
    _
  %s15 = ssub.s32 1, %s13
  %s16 = scalar_select 0, %s15, %s13
  $region1: #{tpu_custom_call.1} parent=0
    #allocation6 [shape = 'u8[512]{0}', space=smem, size = 0x200, scoped, tag = 'input window, operand 0, single buffered']
    #allocation7 [shape = 's32[1]{0}', space=sflag, size = 0x4, scoped, tag = 'scoped memory for tpu_custom_call.1']
    #allocation8 [shape = 's32[1]{0}', space=sflag, size = 0x4, scoped, tag = 'scoped memory for tpu_custom_call.1']
    #allocation9 [shape = 's32[1]{0}', space=sflag, size = 0x4, scoped, tag = 'scoped memory for tpu_custom_call.1']
    #allocation10 [shape = 'u8[8192]{0}', space=vmem, size = 0x2000, scoped, tag = 'input window, operand 1, single buffered']
    #allocation11 [shape = 'u8[8192]{0}', space=vmem, size = 0x2000, scoped, tag = 'input window, operand 2, single buffered']
    #allocation12 [shape = 's32[1]{0}', space=sflag, size = 0x4, scoped, tag = 'scoped memory for tpu_custom_call.1']
    #allocation13 [shape = 'u8[262144]{0}', space=vmem, size = 0x40000, scoped, tag = 'input window, operand 3, single buffered']
    #allocation14 [shape = 'u8[262144]{0}', space=vmem, size = 0x40000, scoped, tag = 'input window, operand 4, single buffered']
    #allocation15 [shape = 's32[1]{0}', space=sflag, size = 0x4, scoped, tag = 'scoped memory for tpu_custom_call.1']
    #allocation16 [shape = 'u8[4096]{0}', space=vmem, size = 0x1000, scoped, tag = 'input window, operand 5, single buffered']
    #allocation17 [shape = 'u8[4096]{0}', space=vmem, size = 0x1000, scoped, tag = 'output window, operand 0, single buffered']
    #allocation18 [shape = 'u8[8192]{0}', space=vmem, size = 0x2000, scoped, tag = 'output window, operand 1, single buffered']
    #allocation19 [shape = 's32[1]{0}', space=sflag, size = 0x4, scoped, tag = 'scoped memory for tpu_custom_call.1']
    #allocation20 [shape = 'u8[8192]{0}', space=vmem, size = 0x2000, scoped, tag = 'output window, operand 2, single buffered']
    %17 = vsyncpa [#allocation9], 0
    %18 = vsyncpa [#allocation7], 0
    %19 = vsyncpa [#allocation12], 0
    %20 = vsyncpa [#allocation15], 0
    %21 = vsyncpa [#allocation8], 0
    %22 = vsyncpa [#allocation19], 0
    // Predicated region
    $region2: #{tpu_custom_call.1} parent=1 // pred_check
      _
    $region3: #{tpu_custom_call.1} parent=1 // pred_check_branch
      %24 = sbr.rel (0) target = $region5
    $region4: #{tpu_custom_call.1} parent=1 // pred_region
      %s26 = ssub.s32 16, 16
      %27 = vsyncadd [#allocation9], %s26
      %s29 = sshll.u32 %s0, 4
      %s30 = int_to_ptr.vmem [resolvable:$true] %s29
      %32 = dma.vmem_to_smem %s30, 16, [#allocation6], [#allocation9]
    $region5: #{tpu_custom_call.1} parent=1 // pred_fallthru
      _
    // Predicated region
    $region6: #{tpu_custom_call.1} parent=1 // pred_check
      _
    $region7: #{tpu_custom_call.1} parent=1 // pred_check_branch
      %34 = sbr.rel (0) target = $region9
    $region8: #{tpu_custom_call.1} parent=1 // pred_region
      %s36 = ssub.s32 256, 256
      %37 = vsyncadd [#allocation7], %s36
      %s38 = sshll.u32 [#allocation10], 4
      %s39 = int_to_ptr.vmem [resolvable:$true] %s38
      %44 = dma.hbm_to_vmem [thread:$0]  %s1, 256, %s39, [#allocation7], 128, 128, 8
    $region9: #{tpu_custom_call.1} parent=1 // pred_fallthru
      _
    // Predicated region
    $region10: #{tpu_custom_call.1} parent=1 // pred_check
      _
    $region11: #{tpu_custom_call.1} parent=1 // pred_check_branch
      %46 = sbr.rel (0) target = $region13
    $region12: #{tpu_custom_call.1} parent=1 // pred_region
      %s48 = ssub.s32 256, 256
      %49 = vsyncadd [#allocation12], %s48
      %s50 = sshll.u32 [#allocation11], 4
      %s51 = int_to_ptr.vmem [resolvable:$true] %s50
      %56 = dma.hbm_to_vmem [thread:$0]  %s2, 256, %s51, [#allocation12], 128, 128, 8
    $region13: #{tpu_custom_call.1} parent=1 // pred_fallthru
      _
    // Predicated region
    $region14: #{tpu_custom_call.1} parent=1 // pred_check
      _
    $region15: #{tpu_custom_call.1} parent=1 // pred_check_branch
      %58 = sbr.rel (0) target = $region17
    $region16: #{tpu_custom_call.1} parent=1 // pred_region
      %s60 = ssub.s32 8192, 8192
      %61 = vsyncadd [#allocation12], %s60
      %s62 = sshll.u32 [#allocation13], 4
      %s63 = int_to_ptr.vmem [resolvable:$true] %s62
      %68 = dma.hbm_to_vmem [thread:$0]  %s3, 8192, %s63, [#allocation12], 256, 256, 16
    $region17: #{tpu_custom_call.1} parent=1 // pred_fallthru
      _
    // Predicated region
    $region18: #{tpu_custom_call.1} parent=1 // pred_check
      _
    $region19: #{tpu_custom_call.1} parent=1 // pred_check_branch
      %70 = sbr.rel (0) target = $region21
    $region20: #{tpu_custom_call.1} parent=1 // pred_region
      %s72 = ssub.s32 8192, 8192
      %73 = vsyncadd [#allocation15], %s72
      %s74 = sshll.u32 [#allocation14], 4
      %s75 = int_to_ptr.vmem [resolvable:$true] %s74
      %80 = dma.hbm_to_vmem [thread:$0]  %s4, 8192, %s75, [#allocation15], 256, 256, 16
    $region21: #{tpu_custom_call.1} parent=1 // pred_fallthru
      _
    // Predicated region
    $region22: #{tpu_custom_call.1} parent=1 // pred_check
      _
    $region23: #{tpu_custom_call.1} parent=1 // pred_check_branch
      %82 = sbr.rel (0) target = $region25
    $region24: #{tpu_custom_call.1} parent=1 // pred_region
      %s84 = ssub.s32 128, 128
      %85 = vsyncadd [#allocation15], %s84
      %s86 = sshll.u32 [#allocation16], 4
      %s87 = int_to_ptr.vmem [resolvable:$true] %s86
      %92 = dma.hbm_to_vmem [thread:$0]  %s5, 128, %s87, [#allocation15], 64, 64, 4
    $region25: #{tpu_custom_call.1} parent=1 // pred_fallthru
      _
    // Predicated region
    $region26: #{tpu_custom_call.1} parent=1 // pred_check
      _
    $region27: #{tpu_custom_call.1} parent=1 // pred_check_branch
      %94 = sbr.rel (0) target = $region29
    $region28: #{tpu_custom_call.1} parent=1 // pred_region
      _
    $region29: #{tpu_custom_call.1} parent=1 // pred_fallthru
      _
    // Predicated region
    $region30: #{tpu_custom_call.1} parent=1 // pred_check
      _
    $region31: #{tpu_custom_call.1} parent=1 // pred_check_branch
      %96 = sbr.rel (0) target = $region33
    $region32: #{tpu_custom_call.1} parent=1 // pred_region
      %97 = dma.done [#allocation9], 16
    $region33: #{tpu_custom_call.1} parent=1 // pred_fallthru
      _
    // Predicated region
    $region34: #{tpu_custom_call.1} parent=1 // pred_check
      _
    $region35: #{tpu_custom_call.1} parent=1 // pred_check_branch
      %99 = sbr.rel (0) target = $region37
    $region36: #{tpu_custom_call.1} parent=1 // pred_region
      %100 = dma.done [#allocation7], 256
    $region37: #{tpu_custom_call.1} parent=1 // pred_fallthru
      _
    // Predicated region
    $region38: #{tpu_custom_call.1} parent=1 // pred_check
      _
    $region39: #{tpu_custom_call.1} parent=1 // pred_check_branch
      %102 = sbr.rel (0) target = $region41
    $region40: #{tpu_custom_call.1} parent=1 // pred_region
      %103 = dma.done [#allocation12], 256
    $region41: #{tpu_custom_call.1} parent=1 // pred_fallthru
      _
    // Predicated region
    $region42: #{tpu_custom_call.1} parent=1 // pred_check
      _
    $region43: #{tpu_custom_call.1} parent=1 // pred_check_branch
      %105 = sbr.rel (0) target = $region45
    $region44: #{tpu_custom_call.1} parent=1 // pred_region
      %106 = dma.done [#allocation12], 8192
    $region45: #{tpu_custom_call.1} parent=1 // pred_fallthru
      _
    // Predicated region
    $region46: #{tpu_custom_call.1} parent=1 // pred_check
      _
    $region47: #{tpu_custom_call.1} parent=1 // pred_check_branch
      %108 = sbr.rel (0) target = $region49
    $region48: #{tpu_custom_call.1} parent=1 // pred_region
      %109 = dma.done [#allocation15], 8192
    $region49: #{tpu_custom_call.1} parent=1 // pred_fallthru
      _
    // Predicated region
    $region50: #{tpu_custom_call.1} parent=1 // pred_check
      _
    $region51: #{tpu_custom_call.1} parent=1 // pred_check_branch
      %111 = sbr.rel (0) target = $region53
    $region52: #{tpu_custom_call.1} parent=1 // pred_region
      %112 = dma.done [#allocation15], 128
    $region53: #{tpu_custom_call.1} parent=1 // pred_fallthru
      _
    %113 = sfence
    %s115 = sld [smem:[#allocation6]]
    %s116 = smul.addr %s115, 16
    %s117 = scalar_lea.hbm %s7, %s116
    // Predicated region
    $region54: #{tpu_custom_call.1} parent=1 // pred_check
      _
    $region55: #{tpu_custom_call.1} parent=1 // pred_check_branch
      %119 = sbr.rel target = $region57
    $region56: #{tpu_custom_call.1} parent=1 // pred_region
      %120 = sst [smem:[#allocation23]] [#allocation22]
      %121 = sst [smem:[#allocation24]] [#allocation21]
    $region57: #{tpu_custom_call.1} parent=1 // pred_fallthru
      _
    %123 = shalt.err (0)
    %s125 = sshll.u32 [#allocation2], 4
    %s126 = int_to_ptr.vmem [resolvable:$true] %s125
    %128 = dma.hbm_to_vmem [thread:$0]  %s117, 16, %s126, [#allocation3]
    %s129 = sld [smem:[#allocation6 + $0x1]]
    %s130 = smul.addr %s129, 16
    %s131 = scalar_lea.hbm %s7, %s130
    %s132 = scalar_lea.vmem [#allocation2], 1
    %s133 = scalar_lea.sflag [#allocation3], 1
    // Predicated region
    $region58: #{tpu_custom_call.1} parent=1 // pred_check
      _
    $region59: #{tpu_custom_call.1} parent=1 // pred_check_branch
      %135 = sbr.rel target = $region61
    $region60: #{tpu_custom_call.1} parent=1 // pred_region
      %136 = sst [smem:[#allocation23]] [#allocation26]
      %137 = sst [smem:[#allocation24]] [#allocation25]
    $region61: #{tpu_custom_call.1} parent=1 // pred_fallthru
      _
    %139 = shalt.err (0)
    %s141 = sshll.u32 %s132, 4
    %s142 = int_to_ptr.vmem [resolvable:$true] %s141
    %144 = dma.hbm_to_vmem [thread:$0]  %s131, 16, %s142, %s133
    %s145 = sld [smem:[#allocation6 + $0x2]]
    %s146 = smul.addr %s145, 16
    %s147 = scalar_lea.hbm %s7, %s146
    %s148 = scalar_lea.vmem [#allocation2], 2
    %s149 = scalar_lea.sflag [#allocation3], 2
    // Predicated region
    $region62: #{tpu_custom_call.1} parent=1 // pred_check
      _
    $region63: #{tpu_custom_call.1} parent=1 // pred_check_branch
      %151 = sbr.rel target = $region65
    $region64: #{tpu_custom_call.1} parent=1 // pred_region
      %152 = sst [smem:[#allocation23]] [#allocation28]
      %153 = sst [smem:[#allocation24]] [#allocation27]
    $region65: #{tpu_custom_call.1} parent=1 // pred_fallthru
      _
    %155 = shalt.err (0)
    %s157 = sshll.u32 %s148, 4
    %s158 = int_to_ptr.vmem [resolvable:$true] %s157
    %160 = dma.hbm_to_vmem [thread:$0]  %s147, 16, %s158, %s149
    %s161 = sld [smem:[#allocation6 + $0x3]]
    %s162 = smul.addr %s161, 16
    %s163 = scalar_lea.hbm %s7, %s162
    %s164 = scalar_lea.vmem [#allocation2], 3
    %s165 = scalar_lea.sflag [#allocation3], 3
    // Predicated region
    $region66: #{tpu_custom_call.1} parent=1 // pred_check
      _
    $region67: #{tpu_custom_call.1} parent=1 // pred_check_branch
      %167 = sbr.rel target = $region69
    $region68: #{tpu_custom_call.1} parent=1 // pred_region
      %168 = sst [smem:[#allocation23]] [#allocation30]
      %169 = sst [smem:[#allocation24]] [#allocation29]
    $region69: #{tpu_custom_call.1} parent=1 // pred_fallthru
      _
    %171 = shalt.err (0)
    %s173 = sshll.u32 %s164, 4
    %s174 = int_to_ptr.vmem [resolvable:$true] %s173
    %176 = dma.hbm_to_vmem [thread:$0]  %s163, 16, %s174, %s165
    %s177 = sld [smem:[#allocation6 + $0x4]]
    %s178 = smul.addr %s177, 16
    %s179 = scalar_lea.hbm %s7, %s178
    %s180 = scalar_lea.vmem [#allocation2], 4
    %s181 = scalar_lea.sflag [#allocation3], 4
    // Predicated region
    $region70: #{tpu_custom_call.1} parent=1 // pred_check
      _
    $region71: #{tpu_custom_call.1} parent=1 // pred_check_branch
      %183 = sbr.rel target = $region73
    $region72: #{tpu_custom_call.1} parent=1 // pred_region
      %184 = sst [smem:[#allocation23]] [#allocation32]
      %185 = sst [smem:[#allocation24]] [#allocation31]
    $region73: #{tpu_custom_call.1} parent=1 // pred_fallthru
      _
    %187 = shalt.err (0)
    %s189 = sshll.u32 %s180, 4
    %s190 = int_to_ptr.vmem [resolvable:$true] %s189
    %192 = dma.hbm_to_vmem [thread:$0]  %s179, 16, %s190, %s181
    %s193 = sld [smem:[#allocation6 + $0x5]]
    %s194 = smul.addr %s193, 16
    %s195 = scalar_lea.hbm %s7, %s194
    %s196 = scalar_lea.vmem [#allocation2], 5
    %s197 = scalar_lea.sflag [#allocation3], 5
    // Predicated region
    $region74: #{tpu_custom_call.1} parent=1 // pred_check
      _
    $region75: #{tpu_custom_call.1} parent=1 // pred_check_branch
      %199 = sbr.rel target = $region77
    $region76: #{tpu_custom_call.1} parent=1 // pred_region
      %200 = sst [smem:[#allocation23]] [#allocation34]
      %201 = sst [smem:[#allocation24]] [#allocation33]
    $region77: #{tpu_custom_call.1} parent=1 // pred_fallthru
      _
    %203 = shalt.err (0)
    %s205 = sshll.u32 %s196, 4
    %s206 = int_to_ptr.vmem [resolvable:$true] %s205
    %208 = dma.hbm_to_vmem [thread:$0]  %s195, 16, %s206, %s197
    %s209 = sld [smem:[#allocation6 + $0x6]]
    %s210 = smul.addr %s209, 16
    %s211 = scalar_lea.hbm %s7, %s210
    %s212 = scalar_lea.vmem [#allocation2], 6
    %s213 = scalar_lea.sflag [#allocation3], 6
    // Predicated region
    $region78: #{tpu_custom_call.1} parent=1 // pred_check
      _
    $region79: #{tpu_custom_call.1} parent=1 // pred_check_branch
      %215 = sbr.rel target = $region81
    $region80: #{tpu_custom_call.1} parent=1 // pred_region
      %216 = sst [smem:[#allocation23]] [#allocation36]
      %217 = sst [smem:[#allocation24]] [#allocation35]
    $region81: #{tpu_custom_call.1} parent=1 // pred_fallthru
      _
    %219 = shalt.err (0)
    %s221 = sshll.u32 %s212, 4
    %s222 = int_to_ptr.vmem [resolvable:$true] %s221
    %224 = dma.hbm_to_vmem [thread:$0]  %s211, 16, %s222, %s213
    %s225 = sld [smem:[#allocation6 + $0x7]]
    %s226 = smul.addr %s225, 16
    %s227 = scalar_lea.hbm %s7, %s226
    %s228 = scalar_lea.vmem [#allocation2], 7
    %s229 = scalar_lea.sflag [#allocation3], 7
    // Predicated region
    $region82: #{tpu_custom_call.1} parent=1 // pred_check
      _
    $region83: #{tpu_custom_call.1} parent=1 // pred_check_branch
      %231 = sbr.rel target = $region85
    $region84: #{tpu_custom_call.1} parent=1 // pred_region
      %232 = sst [smem:[#allocation23]] [#allocation38]
      %233 = sst [smem:[#allocation24]] [#allocation37]
    $region85: #{tpu_custom_call.1} parent=1 // pred_fallthru
      _
    %235 = shalt.err (0)
    %s237 = sshll.u32 %s228, 4
    %s238 = int_to_ptr.vmem [resolvable:$true] %s237
    %240 = dma.hbm_to_vmem [thread:$0]  %s227, 16, %s238, %s229
    %p242 = scmp.lt.u32.totalorder 64, 8
    %p243 = pneg %p242
    // Predicated region
    $region86: #{tpu_custom_call.1} parent=1 // pred_check
      _
    $region87: #{tpu_custom_call.1} parent=1 // pred_check_branch
      %245 = sbr.rel (%p242) target = $region89
    $region88: #{tpu_custom_call.1} parent=1 // pred_region
      %s260 = sand.u32 64, 7
      %p261 = scmp.eq.s32.totalorder %s260, 0
      // Predicated region
      $region101: #{tpu_custom_call.1} parent=88 // pred_check
        %p262 = pneg %p261
      $region102: #{tpu_custom_call.1} parent=88 // pred_check_branch
        %264 = sbr.rel (%p262) target = $region104
      $region103: #{tpu_custom_call.1} parent=88 // pred_region
        loop: start=0, step=1, limit=1
        $region105: #{tpu_custom_call.1} parent=103 // loop_pre_header
          _
        $region106: #{tpu_custom_call.1} parent=103 // loop_header
          %s266 = sphi 0, %s270
          %p267 = scmp.ge.s32.totalorder %s266, 1
          %s271 = sphi %s8, %s8
          %s272 = sphi [#allocation4], [#allocation4]
        $region107: #{tpu_custom_call.1} parent=103 // loop_header_branch
          %269 = sbr.rel (%p267) target = $region111
        $region108: #{tpu_custom_call.1} parent=103 // loop_body
          %v273 = vld [vmem:[%s271] sm:$0xff]
          %274 = vst [vmem:[%s272] sm:$0xff] %v273
          %v275 = vld [vmem:[%s271 + $0x8] sm:$0xff]
          %276 = vst [vmem:[%s272 + $0x8] sm:$0xff] %v275
          %v277 = vld [vmem:[%s271 + $0x10] sm:$0xff]
          %278 = vst [vmem:[%s272 + $0x10] sm:$0xff] %v277
          %v279 = vld [vmem:[%s271 + $0x18] sm:$0xff]
          %280 = vst [vmem:[%s272 + $0x18] sm:$0xff] %v279
          %v281 = vld [vmem:[%s271 + $0x20] sm:$0xff]
          %282 = vst [vmem:[%s272 + $0x20] sm:$0xff] %v281
          %v283 = vld [vmem:[%s271 + $0x28] sm:$0xff]
          %284 = vst [vmem:[%s272 + $0x28] sm:$0xff] %v283
          %v285 = vld [vmem:[%s271 + $0x30] sm:$0xff]
          %286 = vst [vmem:[%s272 + $0x30] sm:$0xff] %v285
          %v287 = vld [vmem:[%s271 + $0x38] sm:$0xff]
          %288 = vst [vmem:[%s272 + $0x38] sm:$0xff] %v287
        $region109: #{tpu_custom_call.1} parent=103 // loop_footer
          %s270 = sadd.s32 1, %s266
        $region110: #{tpu_custom_call.1} parent=103 // loop_footer_branch
          %265 = sbr.rel target = $region106
        $region111: #{tpu_custom_call.1} parent=103 // loop_exit
          _
      $region104: #{tpu_custom_call.1} parent=88 // pred_fallthru
        _
      %p289 = pneg %p261
      // Predicated region
      $region112: #{tpu_custom_call.1} parent=88 // pred_check
        _
      $region113: #{tpu_custom_call.1} parent=88 // pred_check_branch
        %291 = sbr.rel (%p261) target = $region115
      $region114: #{tpu_custom_call.1} parent=88 // pred_region
        %s292 = sand.u32 64, 7
      $region115: #{tpu_custom_call.1} parent=88 // pred_fallthru
        _
    $region89: #{tpu_custom_call.1} parent=1 // pred_fallthru
      _
    // Predicated region
    $region90: #{tpu_custom_call.1} parent=1 // pred_check
      %p246 = pneg %p242
    $region91: #{tpu_custom_call.1} parent=1 // pred_check_branch
      %248 = sbr.rel (%p246) target = $region93
    $region92: #{tpu_custom_call.1} parent=1 // pred_region
      %s249 = sshllo.u32 0, 64
      loop: start=0, step=1, limit=1
      $region94: #{tpu_custom_call.1} parent=92 // loop_pre_header
        _
      $region95: #{tpu_custom_call.1} parent=92 // loop_header
        %s251 = sphi 0, %s255
        %p252 = scmp.ge.s32.totalorder %s251, 1
        %s256 = sphi %s8, %s8
        %s257 = sphi [#allocation4], [#allocation4]
      $region96: #{tpu_custom_call.1} parent=92 // loop_header_branch
        %254 = sbr.rel (%p252) target = $region100
      $region97: #{tpu_custom_call.1} parent=92 // loop_body
        %v258 = vld [vmem:[%s256] sm:%s249]
        %259 = vst [vmem:[%s257] sm:%s249] %v258
      $region98: #{tpu_custom_call.1} parent=92 // loop_footer
        %s255 = sadd.s32 1, %s251
      $region99: #{tpu_custom_call.1} parent=92 // loop_footer_branch
        %250 = sbr.rel target = $region95
      $region100: #{tpu_custom_call.1} parent=92 // loop_exit
        _
    $region93: #{tpu_custom_call.1} parent=1 // pred_fallthru
      _
    // Predicated region
    $region116: #{tpu_custom_call.1} parent=1 // pred_check
      _
    $region117: #{tpu_custom_call.1} parent=1 // pred_check_branch
      %295 = sbr.rel (0) target = $region119
    $region118: #{tpu_custom_call.1} parent=1 // pred_region
      %296 = vsyncadd [#allocation5], 1024
    $region119: #{tpu_custom_call.1} parent=1 // pred_fallthru
      _
    %s297 = smul.u32 1, 1
    %s298 = sshll.u32 %s297, 4
    %299 = dma.done [#allocation3], %s298
    %s300 = sshll.u32 %s297, 4
    %301 = dma.done %s133, %s300
    %s302 = sshll.u32 %s297, 4
    %303 = dma.done %s149, %s302
    %s304 = sshll.u32 %s297, 4
    %305 = dma.done %s165, %s304
    %s306 = sshll.u32 %s297, 4
    %307 = dma.done %s181, %s306
    %s308 = sshll.u32 %s297, 4
    %309 = dma.done %s197, %s308
    %s310 = sshll.u32 %s297, 4
    %311 = dma.done %s213, %s310
    %s312 = sshll.u32 %s297, 4
    %313 = dma.done %s229, %s312
    %v314 = vld [vmem:[#allocation2] sm:$0xff]
    %v315 = vmax.f32 %v314, 0.0
    %v316 = vpack.c.bf16 %v315, %v315
    %v317 = vld [vmem:[#allocation10] sm:$0xff]
    %v318 = vld [vmem:[#allocation11] sm:$0xff]
    %v319 = vld [vmem:[#allocation13] sm:$0xff]
    %v320 = vld [vmem:[#allocation13 + $0x8] sm:$0xff]
    %v321 = vld [vmem:[#allocation13 + $0x10] sm:$0xff]
    %v322 = vld [vmem:[#allocation13 + $0x18] sm:$0xff]
    %v323 = vld [vmem:[#allocation13 + $0x20] sm:$0xff]
    %v324 = vld [vmem:[#allocation13 + $0x28] sm:$0xff]
    %v325 = vld [vmem:[#allocation13 + $0x30] sm:$0xff]
    %v326 = vld [vmem:[#allocation13 + $0x38] sm:$0xff]
    %v327 = vpack.c.bf16 %v317, %v317
    %v328 = vld [vmem:[#allocation14] sm:$0xff]
    %v329 = vld [vmem:[#allocation14 + $0x8] sm:$0xff]
    %v330 = vld [vmem:[#allocation14 + $0x10] sm:$0xff]
    %v331 = vld [vmem:[#allocation14 + $0x18] sm:$0xff]
    %v332 = vld [vmem:[#allocation14 + $0x20] sm:$0xff]
    %v333 = vld [vmem:[#allocation14 + $0x28] sm:$0xff]
    %v334 = vld [vmem:[#allocation14 + $0x30] sm:$0xff]
    %v335 = vld [vmem:[#allocation14 + $0x38] sm:$0xff]
    %v336 = vld [vmem:[#allocation14 + $0x40] sm:$0xff]
    %v337 = vld [vmem:[#allocation14 + $0x48] sm:$0xff]
    %v338 = vld [vmem:[#allocation14 + $0x50] sm:$0xff]
    %v339 = vld [vmem:[#allocation14 + $0x58] sm:$0xff]
    %v340 = vld [vmem:[#allocation14 + $0x60] sm:$0xff]
    %v341 = vld [vmem:[#allocation14 + $0x68] sm:$0xff]
    %v342 = vld [vmem:[#allocation14 + $0x70] sm:$0xff]
    %v343 = vld [vmem:[#allocation14 + $0x78] sm:$0xff]
    %v344 = vld [vmem:[#allocation14 + $0x80] sm:$0xff]
    %v345 = vld [vmem:[#allocation14 + $0x88] sm:$0xff]
    %v346 = vld [vmem:[#allocation14 + $0x90] sm:$0xff]
    %v347 = vld [vmem:[#allocation14 + $0x98] sm:$0xff]
    %v348 = vld [vmem:[#allocation14 + $0xa0] sm:$0xff]
    %v349 = vld [vmem:[#allocation14 + $0xa8] sm:$0xff]
    %v350 = vld [vmem:[#allocation14 + $0xb0] sm:$0xff]
    %v351 = vld [vmem:[#allocation14 + $0xb8] sm:$0xff]
    %v352 = vld [vmem:[#allocation14 + $0xc0] sm:$0xff]
    %v353 = vld [vmem:[#allocation14 + $0xc8] sm:$0xff]
    %v354 = vld [vmem:[#allocation14 + $0xd0] sm:$0xff]
    %v355 = vld [vmem:[#allocation14 + $0xd8] sm:$0xff]
    %v356 = vld [vmem:[#allocation14 + $0xe0] sm:$0xff]
    %v357 = vld [vmem:[#allocation14 + $0xe8] sm:$0xff]
    %v358 = vld [vmem:[#allocation14 + $0xf0] sm:$0xff]
    %v359 = vld [vmem:[#allocation14 + $0xf8] sm:$0xff]
    %v392 = vunpack.c.l.b16 %v328
    %v393 = vunpack.c.h.b16 %v328
    %v394 = vunpack.c.l.b16 %v329
    %v395 = vunpack.c.h.b16 %v329
    %v396 = vunpack.c.l.b16 %v330
    %v397 = vunpack.c.h.b16 %v330
    %v398 = vunpack.c.l.b16 %v331
    %v399 = vunpack.c.h.b16 %v331
    %v400 = vunpack.c.l.b16 %v332
    %v401 = vunpack.c.h.b16 %v332
    %v402 = vunpack.c.l.b16 %v333
    %v403 = vunpack.c.h.b16 %v333
    %v404 = vunpack.c.l.b16 %v334
    %v405 = vunpack.c.h.b16 %v334
    %v406 = vunpack.c.l.b16 %v335
    %v407 = vunpack.c.h.b16 %v335
    %v408 = vunpack.c.l.b16 %v336
    %v409 = vunpack.c.h.b16 %v336
    %v410 = vunpack.c.l.b16 %v337
    %v411 = vunpack.c.h.b16 %v337
    %v412 = vunpack.c.l.b16 %v338
    %v413 = vunpack.c.h.b16 %v338
    %v414 = vunpack.c.l.b16 %v339
    %v415 = vunpack.c.h.b16 %v339
    %v416 = vunpack.c.l.b16 %v340
    %v417 = vunpack.c.h.b16 %v340
    %v418 = vunpack.c.l.b16 %v341
    %v419 = vunpack.c.h.b16 %v341
    %v420 = vunpack.c.l.b16 %v342
    %v421 = vunpack.c.h.b16 %v342
    %v422 = vunpack.c.l.b16 %v343
    %v423 = vunpack.c.h.b16 %v343
    %v424 = vunpack.c.l.b16 %v344
    %v425 = vunpack.c.h.b16 %v344
    %v426 = vunpack.c.l.b16 %v345
    %v427 = vunpack.c.h.b16 %v345
    %v428 = vunpack.c.l.b16 %v346
    %v429 = vunpack.c.h.b16 %v346
    %v430 = vunpack.c.l.b16 %v347
    %v431 = vunpack.c.h.b16 %v347
    %v432 = vunpack.c.l.b16 %v348
    %v433 = vunpack.c.h.b16 %v348
    %v434 = vunpack.c.l.b16 %v349
    %v435 = vunpack.c.h.b16 %v349
    %v436 = vunpack.c.l.b16 %v350
    %v437 = vunpack.c.h.b16 %v350
    %v438 = vunpack.c.l.b16 %v351
    %v439 = vunpack.c.h.b16 %v351
    %v440 = vunpack.c.l.b16 %v352
    %v441 = vunpack.c.h.b16 %v352
    %v442 = vunpack.c.l.b16 %v353
    %v443 = vunpack.c.h.b16 %v353
    %v444 = vunpack.c.l.b16 %v354
    %v445 = vunpack.c.h.b16 %v354
    %v446 = vunpack.c.l.b16 %v355
    %v447 = vunpack.c.h.b16 %v355
    %v448 = vunpack.c.l.b16 %v356
    %v449 = vunpack.c.h.b16 %v356
    %v450 = vunpack.c.l.b16 %v357
    %v451 = vunpack.c.h.b16 %v357
    %v452 = vunpack.c.l.b16 %v358
    %v453 = vunpack.c.h.b16 %v358
    %v454 = vunpack.c.l.b16 %v359
    %v455 = vunpack.c.h.b16 %v359
    %v456 = vpack.c.b16 %v396, %v392
    %v457 = vpack.c.b16 %v397, %v393
    %v458 = vpack.c.b16 %v398, %v394
    %v459 = vpack.c.b16 %v399, %v395
    %v460 = vpack.c.b16 %v404, %v400
    %v461 = vpack.c.b16 %v405, %v401
    %v462 = vpack.c.b16 %v406, %v402
    %v463 = vpack.c.b16 %v407, %v403
    %v464 = vpack.c.b16 %v412, %v408
    %v465 = vpack.c.b16 %v413, %v409
    %v466 = vpack.c.b16 %v414, %v410
    %v467 = vpack.c.b16 %v415, %v411
    %v468 = vpack.c.b16 %v420, %v416
    %v469 = vpack.c.b16 %v421, %v417
    %v470 = vpack.c.b16 %v422, %v418
    %v471 = vpack.c.b16 %v423, %v419
    %v472 = vpack.c.b16 %v428, %v424
    %v473 = vpack.c.b16 %v429, %v425
    %v474 = vpack.c.b16 %v430, %v426
    %v475 = vpack.c.b16 %v431, %v427
    %v476 = vpack.c.b16 %v436, %v432
    %v477 = vpack.c.b16 %v437, %v433
    %v478 = vpack.c.b16 %v438, %v434
    %v479 = vpack.c.b16 %v439, %v435
    %v480 = vpack.c.b16 %v444, %v440
    %v481 = vpack.c.b16 %v445, %v441
    %v482 = vpack.c.b16 %v446, %v442
    %v483 = vpack.c.b16 %v447, %v443
    %v484 = vpack.c.b16 %v452, %v448
    %v485 = vpack.c.b16 %v453, %v449
    %v486 = vpack.c.b16 %v454, %v450
    %v487 = vpack.c.b16 %v455, %v451
    %520 = vmatprep.subr.bf16.mxu0 %v457
    %521 = vmatpush1.bf16.msra.mxu0 %v456
    %522 = vmatprep.subr.bf16.mxu0 %v461
    %523 = vmatpush1.bf16.msra.mxu0 %v460
    %524 = vmatprep.subr.bf16.mxu0 %v465
    %525 = vmatpush1.bf16.msra.mxu0 %v464
    %526 = vmatprep.subr.bf16.mxu0 %v469
    %527 = vmatpush1.bf16.msra.mxu0 %v468
    %528 = vmatprep.subr.bf16.mxu0 %v473
    %529 = vmatpush1.bf16.msra.mxu0 %v472
    %530 = vmatprep.subr.bf16.mxu0 %v477
    %531 = vmatpush1.bf16.msra.mxu0 %v476
    %532 = vmatprep.subr.bf16.mxu0 %v481
    %533 = vmatpush1.bf16.msra.mxu0 %v480
    %534 = vmatprep.subr.bf16.mxu0 %v485
    %535 = vmatpush1.bf16.msra.mxu0 %v484
    %536 = vmatprep.subr.bf16.mxu0 0
    %537 = vmatpush1.bf16.msra.mxu0 0
    %538 = vmatprep.subr.bf16.mxu0 0
    %539 = vmatpush1.bf16.msra.mxu0 0
    %540 = vmatprep.subr.bf16.mxu0 0
    %541 = vmatpush1.bf16.msra.mxu0 0
    %542 = vmatprep.subr.bf16.mxu0 0
    %543 = vmatpush1.bf16.msra.mxu0 0
    %544 = vmatprep.subr.bf16.mxu0 0
    %545 = vmatpush1.bf16.msra.mxu0 0
    %546 = vmatprep.subr.bf16.mxu0 0
    %547 = vmatpush1.bf16.msra.mxu0 0
    %548 = vmatprep.subr.bf16.mxu0 0
    %549 = vmatpush1.bf16.msra.mxu0 0
    %550 = vmatprep.subr.bf16.mxu0 0
    %551 = vmatpush1.bf16.msra.mxu0 0
    %552 = vmatprep.mubr.bf16.mxu0 0
    %553 = vmatmul.mubr.bf16.gmra.mrb[0].mxu0 %v327
    %v554 = vpop.f32.mrb[0].mxu0
    %v555 = vadd.f32 0.0, %v554
    %v556 = vpop.f32.mrb[0].mxu0
    %v557 = vadd.f32 0.0, %v556
    %v558 = vpop.f32.mrb[0].mxu0
    %v559 = vpop.f32.mrb[0].mxu0
    %560 = vdwg.mxu0
    %561 = vmatprep.subr.bf16.mxu0 %v459
    %562 = vmatpush1.bf16.msra.mxu0 %v458
    %563 = vmatprep.subr.bf16.mxu0 %v463
    %564 = vmatpush1.bf16.msra.mxu0 %v462
    %565 = vmatprep.subr.bf16.mxu0 %v467
    %566 = vmatpush1.bf16.msra.mxu0 %v466
    %567 = vmatprep.subr.bf16.mxu0 %v471
    %568 = vmatpush1.bf16.msra.mxu0 %v470
    %569 = vmatprep.subr.bf16.mxu0 %v475
    %570 = vmatpush1.bf16.msra.mxu0 %v474
    %571 = vmatprep.subr.bf16.mxu0 %v479
    %572 = vmatpush1.bf16.msra.mxu0 %v478
    %573 = vmatprep.subr.bf16.mxu0 %v483
    %574 = vmatpush1.bf16.msra.mxu0 %v482
    %575 = vmatprep.subr.bf16.mxu0 %v487
    %576 = vmatpush1.bf16.msra.mxu0 %v486
    %577 = vmatprep.subr.bf16.mxu0 0
    %578 = vmatpush1.bf16.msra.mxu0 0
    %579 = vmatprep.subr.bf16.mxu0 0
    %580 = vmatpush1.bf16.msra.mxu0 0
    %581 = vmatprep.subr.bf16.mxu0 0
    %582 = vmatpush1.bf16.msra.mxu0 0
    %583 = vmatprep.subr.bf16.mxu0 0
    %584 = vmatpush1.bf16.msra.mxu0 0
    %585 = vmatprep.subr.bf16.mxu0 0
    %586 = vmatpush1.bf16.msra.mxu0 0
    %587 = vmatprep.subr.bf16.mxu0 0
    %588 = vmatpush1.bf16.msra.mxu0 0
    %589 = vmatprep.subr.bf16.mxu0 0
    %590 = vmatpush1.bf16.msra.mxu0 0
    %591 = vmatprep.subr.bf16.mxu0 0
    %592 = vmatpush1.bf16.msra.mxu0 0
    %593 = vmatprep.mubr.bf16.mxu0 0
    %594 = vmatmul.mubr.bf16.gmra.mrb[0].mxu0 %v327
    %v595 = vpop.f32.mrb[0].mxu0
    %v596 = vadd.f32 0.0, %v595
    %v597 = vpop.f32.mrb[0].mxu0
    %v598 = vadd.f32 0.0, %v597
    %v599 = vpop.f32.mrb[0].mxu0
    %v600 = vpop.f32.mrb[0].mxu0
    %601 = vdwg.mxu0
    %v610 = vunpack.c.l.b16 %v319
    %v611 = vunpack.c.h.b16 %v319
    %v612 = vunpack.c.l.b16 %v320
    %v613 = vunpack.c.h.b16 %v320
    %v614 = vunpack.c.l.b16 %v321
    %v615 = vunpack.c.h.b16 %v321
    %v616 = vunpack.c.l.b16 %v322
    %v617 = vunpack.c.h.b16 %v322
    %v618 = vunpack.c.l.b16 %v323
    %v619 = vunpack.c.h.b16 %v323
    %v620 = vunpack.c.l.b16 %v324
    %v621 = vunpack.c.h.b16 %v324
    %v622 = vunpack.c.l.b16 %v325
    %v623 = vunpack.c.h.b16 %v325
    %v624 = vunpack.c.l.b16 %v326
    %v625 = vunpack.c.h.b16 %v326
    %v626 = vpack.c.b16 %v614, %v610
    %v627 = vpack.c.b16 %v615, %v611
    %v628 = vpack.c.b16 %v616, %v612
    %v629 = vpack.c.b16 %v617, %v613
    %v630 = vpack.c.b16 %v622, %v618
    %v631 = vpack.c.b16 %v623, %v619
    %v632 = vpack.c.b16 %v624, %v620
    %v633 = vpack.c.b16 %v625, %v621
    %vm642 = vcmask 261120
    %v644 = vsel %vm642, %v316, 0
    %646 = vmatprep.subr.bf16.mxu0 %v627
    %647 = vmatpush1.bf16.msra.mxu0 %v626
    %648 = vmatprep.subr.bf16.mxu0 %v631
    %649 = vmatpush1.bf16.msra.mxu0 %v630
    %650 = vmatprep.subr.bf16.mxu0 0
    %651 = vmatpush1.bf16.msra.mxu0 0
    %652 = vmatprep.subr.bf16.mxu0 0
    %653 = vmatpush1.bf16.msra.mxu0 0
    %654 = vmatprep.subr.bf16.mxu0 0
    %655 = vmatpush1.bf16.msra.mxu0 0
    %656 = vmatprep.subr.bf16.mxu0 0
    %657 = vmatpush1.bf16.msra.mxu0 0
    %658 = vmatprep.subr.bf16.mxu0 0
    %659 = vmatpush1.bf16.msra.mxu0 0
    %660 = vmatprep.subr.bf16.mxu0 0
    %661 = vmatpush1.bf16.msra.mxu0 0
    %662 = vmatprep.subr.bf16.mxu0 0
    %663 = vmatpush1.bf16.msra.mxu0 0
    %664 = vmatprep.subr.bf16.mxu0 0
    %665 = vmatpush1.bf16.msra.mxu0 0
    %666 = vmatprep.subr.bf16.mxu0 0
    %667 = vmatpush1.bf16.msra.mxu0 0
    %668 = vmatprep.subr.bf16.mxu0 0
    %669 = vmatpush1.bf16.msra.mxu0 0
    %670 = vmatprep.subr.bf16.mxu0 0
    %671 = vmatpush1.bf16.msra.mxu0 0
    %672 = vmatprep.subr.bf16.mxu0 0
    %673 = vmatpush1.bf16.msra.mxu0 0
    %674 = vmatprep.subr.bf16.mxu0 0
    %675 = vmatpush1.bf16.msra.mxu0 0
    %676 = vmatprep.subr.bf16.mxu0 0
    %677 = vmatpush1.bf16.msra.mxu0 0
    %678 = vmatprep.mubr.bf16.mxu0 0
    %679 = vmatmul.mubr.bf16.gmra.mrb[0].mxu0 %v644
    %v680 = vpop.f32.mrb[0].mxu0
    %v681 = vadd.f32 %v555, %v680
    %v682 = vpop.f32.mrb[0].mxu0
    %v683 = vadd.f32 %v557, %v682
    %v684 = vpop.f32.mrb[0].mxu0
    %v685 = vpop.f32.mrb[0].mxu0
    %686 = vdwg.mxu0
    %687 = vmatprep.subr.bf16.mxu0 %v629
    %688 = vmatpush1.bf16.msra.mxu0 %v628
    %689 = vmatprep.subr.bf16.mxu0 %v633
    %690 = vmatpush1.bf16.msra.mxu0 %v632
    %691 = vmatprep.subr.bf16.mxu0 0
    %692 = vmatpush1.bf16.msra.mxu0 0
    %693 = vmatprep.subr.bf16.mxu0 0
    %694 = vmatpush1.bf16.msra.mxu0 0
    %695 = vmatprep.subr.bf16.mxu0 0
    %696 = vmatpush1.bf16.msra.mxu0 0
    %697 = vmatprep.subr.bf16.mxu0 0
    %698 = vmatpush1.bf16.msra.mxu0 0
    %699 = vmatprep.subr.bf16.mxu0 0
    %700 = vmatpush1.bf16.msra.mxu0 0
    %701 = vmatprep.subr.bf16.mxu0 0
    %702 = vmatpush1.bf16.msra.mxu0 0
    %703 = vmatprep.subr.bf16.mxu0 0
    %704 = vmatpush1.bf16.msra.mxu0 0
    %705 = vmatprep.subr.bf16.mxu0 0
    %706 = vmatpush1.bf16.msra.mxu0 0
    %707 = vmatprep.subr.bf16.mxu0 0
    %708 = vmatpush1.bf16.msra.mxu0 0
    %709 = vmatprep.subr.bf16.mxu0 0
    %710 = vmatpush1.bf16.msra.mxu0 0
    %711 = vmatprep.subr.bf16.mxu0 0
    %712 = vmatpush1.bf16.msra.mxu0 0
    %713 = vmatprep.subr.bf16.mxu0 0
    %714 = vmatpush1.bf16.msra.mxu0 0
    %715 = vmatprep.subr.bf16.mxu0 0
    %716 = vmatpush1.bf16.msra.mxu0 0
    %717 = vmatprep.subr.bf16.mxu0 0
    %718 = vmatpush1.bf16.msra.mxu0 0
    %719 = vmatprep.mubr.bf16.mxu0 0
    %720 = vmatmul.mubr.bf16.gmra.mrb[0].mxu0 %v644
    %v721 = vpop.f32.mrb[0].mxu0
    %v722 = vadd.f32 %v596, %v721
    %v723 = vpop.f32.mrb[0].mxu0
    %v724 = vadd.f32 %v598, %v723
    %v725 = vpop.f32.mrb[0].mxu0
    %v726 = vpop.f32.mrb[0].mxu0
    %727 = vdwg.mxu0
    %v728 = vld [vmem:[#allocation16] sm:$0xf]
    %v730 = vlaneseq
    %v731 = vshrl.u32 %v730, 7
    %v732 = vsub.s32 0, %v731
    %v733 = vrot.slane %v728, %v732
    %v734 = vlaneseq
    %v735 = vshrl.u32 %v734, 7
    %v736 = vsub.s32 1, %v735
    %v737 = vrot.slane %v728, %v736
    %v738 = vlaneseq
    %v739 = vshrl.u32 %v738, 7
    %v740 = vsub.s32 2, %v739
    %v741 = vrot.slane %v728, %v740
    %v742 = vlaneseq
    %v743 = vshrl.u32 %v742, 7
    %v744 = vsub.s32 3, %v743
    %v745 = vrot.slane %v728, %v744
    %v750 = vadd.f32 %v681, %v733
    %v751 = vadd.f32 %v683, %v737
    %v752 = vadd.f32 %v722, %v741
    %v753 = vadd.f32 %v724, %v745
    %v754 = vxor.u32 %v750, 2147483648
    %v755 = vxor.u32 %v751, 2147483648
    %v756 = vxor.u32 %v753, 2147483648
    %v757 = vmul.f32 %v754, 1.442695
    %v758 = vpow.pop %v757
    %v759 = vmul.f32 %v755, 1.442695
    %v760 = vpow.pop %v759
    %v761 = vmul.f32 %v756, 1.442695
    %v762 = vpow.pop %v761
    %v763 = vadd.f32 %v758, 1.0
    %v764 = vadd.f32 %v760, 1.0
    %v765 = vadd.f32 %v762, 1.0
    %v766 = vrcp.pop %v763
    %v767 = vmul.f32 1.0, %v766
    %v768 = vrcp.pop %v764
    %v769 = vmul.f32 1.0, %v768
    %v770 = vrcp.pop %v765
    %v771 = vmul.f32 1.0, %v770
    %v772 = vtanh.pop %v752
    %v773 = vmul.f32 %v769, %v318
    %v774 = vmul.f32 %v767, %v772
    %v775 = vadd.f32 %v773, %v774
    %v776 = vtanh.pop %v775
    %v777 = vmul.f32 %v771, %v776
    %778 = vst [vmem:[#allocation18] sm:$0xff] %v777
    %779 = vst [vmem:[#allocation20] sm:$0xff] %v775
    %v780 = vpack.c.bf16 %v777, %v777
    %s781 = scalar_lea.vmem [#allocation10], 8
    %v782 = vld [vmem:[%s781] sm:$0xff]
    %s783 = scalar_lea.vmem [#allocation11], 8
    %v784 = vld [vmem:[%s783] sm:$0xff]
    %s785 = scalar_lea.vmem [#allocation13], 256
    %v786 = vld [vmem:[%s785] sm:$0xff]
    %v787 = vld [vmem:[%s785 + $0x8] sm:$0xff]
    %v788 = vld [vmem:[%s785 + $0x10] sm:$0xff]
    %v789 = vld [vmem:[%s785 + $0x18] sm:$0xff]
    %v790 = vld [vmem:[%s785 + $0x20] sm:$0xff]
    %v791 = vld [vmem:[%s785 + $0x28] sm:$0xff]
    %v792 = vld [vmem:[%s785 + $0x30] sm:$0xff]
    %v793 = vld [vmem:[%s785 + $0x38] sm:$0xff]
    %v794 = vld [vmem:[%s785 + $0x40] sm:$0xff]
    %v795 = vld [vmem:[%s785 + $0x48] sm:$0xff]
    %v796 = vld [vmem:[%s785 + $0x50] sm:$0xff]
    %v797 = vld [vmem:[%s785 + $0x58] sm:$0xff]
    %v798 = vld [vmem:[%s785 + $0x60] sm:$0xff]
    %v799 = vld [vmem:[%s785 + $0x68] sm:$0xff]
    %v800 = vld [vmem:[%s785 + $0x70] sm:$0xff]
    %v801 = vld [vmem:[%s785 + $0x78] sm:$0xff]
    %v802 = vld [vmem:[%s785 + $0x80] sm:$0xff]
    %v803 = vld [vmem:[%s785 + $0x88] sm:$0xff]
    %v804 = vld [vmem:[%s785 + $0x90] sm:$0xff]
    %v805 = vld [vmem:[%s785 + $0x98] sm:$0xff]
    %v806 = vld [vmem:[%s785 + $0xa0] sm:$0xff]
    %v807 = vld [vmem:[%s785 + $0xa8] sm:$0xff]
    %v808 = vld [vmem:[%s785 + $0xb0] sm:$0xff]
    %v809 = vld [vmem:[%s785 + $0xb8] sm:$0xff]
    %v810 = vld [vmem:[%s785 + $0xc0] sm:$0xff]
    %v811 = vld [vmem:[%s785 + $0xc8] sm:$0xff]
    %v812 = vld [vmem:[%s785 + $0xd0] sm:$0xff]
    %v813 = vld [vmem:[%s785 + $0xd8] sm:$0xff]
    %v814 = vld [vmem:[%s785 + $0xe0] sm:$0xff]
    %v815 = vld [vmem:[%s785 + $0xe8] sm:$0xff]
    %v816 = vld [vmem:[%s785 + $0xf0] sm:$0xff]
    %v817 = vld [vmem:[%s785 + $0xf8] sm:$0xff]
    %v818 = vpack.c.bf16 %v782, %v782
    %s819 = scalar_lea.vmem [#allocation14], 256
    %v820 = vld [vmem:[%s819] sm:$0xff]
    %v821 = vld [vmem:[%s819 + $0x8] sm:$0xff]
    %v822 = vld [vmem:[%s819 + $0x10] sm:$0xff]
    %v823 = vld [vmem:[%s819 + $0x18] sm:$0xff]
    %v824 = vld [vmem:[%s819 + $0x20] sm:$0xff]
    %v825 = vld [vmem:[%s819 + $0x28] sm:$0xff]
    %v826 = vld [vmem:[%s819 + $0x30] sm:$0xff]
    %v827 = vld [vmem:[%s819 + $0x38] sm:$0xff]
    %v828 = vld [vmem:[%s819 + $0x40] sm:$0xff]
    %v829 = vld [vmem:[%s819 + $0x48] sm:$0xff]
    %v830 = vld [vmem:[%s819 + $0x50] sm:$0xff]
    %v831 = vld [vmem:[%s819 + $0x58] sm:$0xff]
    %v832 = vld [vmem:[%s819 + $0x60] sm:$0xff]
    %v833 = vld [vmem:[%s819 + $0x68] sm:$0xff]
    %v834 = vld [vmem:[%s819 + $0x70] sm:$0xff]
    %v835 = vld [vmem:[%s819 + $0x78] sm:$0xff]
    %v836 = vld [vmem:[%s819 + $0x80] sm:$0xff]
    %v837 = vld [vmem:[%s819 + $0x88] sm:$0xff]
    %v838 = vld [vmem:[%s819 + $0x90] sm:$0xff]
    %v839 = vld [vmem:[%s819 + $0x98] sm:$0xff]
    %v840 = vld [vmem:[%s819 + $0xa0] sm:$0xff]
    %v841 = vld [vmem:[%s819 + $0xa8] sm:$0xff]
    %v842 = vld [vmem:[%s819 + $0xb0] sm:$0xff]
    %v843 = vld [vmem:[%s819 + $0xb8] sm:$0xff]
    %v844 = vld [vmem:[%s819 + $0xc0] sm:$0xff]
    %v845 = vld [vmem:[%s819 + $0xc8] sm:$0xff]
    %v846 = vld [vmem:[%s819 + $0xd0] sm:$0xff]
    %v847 = vld [vmem:[%s819 + $0xd8] sm:$0xff]
    %v848 = vld [vmem:[%s819 + $0xe0] sm:$0xff]
    %v849 = vld [vmem:[%s819 + $0xe8] sm:$0xff]
    %v850 = vld [vmem:[%s819 + $0xf0] sm:$0xff]
    %v851 = vld [vmem:[%s819 + $0xf8] sm:$0xff]
    %v884 = vunpack.c.l.b16 %v820
    %v885 = vunpack.c.h.b16 %v820
    %v886 = vunpack.c.l.b16 %v821
    %v887 = vunpack.c.h.b16 %v821
    %v888 = vunpack.c.l.b16 %v822
    %v889 = vunpack.c.h.b16 %v822
    %v890 = vunpack.c.l.b16 %v823
    %v891 = vunpack.c.h.b16 %v823
    %v892 = vunpack.c.l.b16 %v824
    %v893 = vunpack.c.h.b16 %v824
    %v894 = vunpack.c.l.b16 %v825
    %v895 = vunpack.c.h.b16 %v825
    %v896 = vunpack.c.l.b16 %v826
    %v897 = vunpack.c.h.b16 %v826
    %v898 = vunpack.c.l.b16 %v827
    %v899 = vunpack.c.h.b16 %v827
    %v900 = vunpack.c.l.b16 %v828
    %v901 = vunpack.c.h.b16 %v828
    %v902 = vunpack.c.l.b16 %v829
    %v903 = vunpack.c.h.b16 %v829
    %v904 = vunpack.c.l.b16 %v830
    %v905 = vunpack.c.h.b16 %v830
    %v906 = vunpack.c.l.b16 %v831
    %v907 = vunpack.c.h.b16 %v831
    %v908 = vunpack.c.l.b16 %v832
    %v909 = vunpack.c.h.b16 %v832
    %v910 = vunpack.c.l.b16 %v833
    %v911 = vunpack.c.h.b16 %v833
    %v912 = vunpack.c.l.b16 %v834
    %v913 = vunpack.c.h.b16 %v834
    %v914 = vunpack.c.l.b16 %v835
    %v915 = vunpack.c.h.b16 %v835
    %v916 = vunpack.c.l.b16 %v836
    %v917 = vunpack.c.h.b16 %v836
    %v918 = vunpack.c.l.b16 %v837
    %v919 = vunpack.c.h.b16 %v837
    %v920 = vunpack.c.l.b16 %v838
    %v921 = vunpack.c.h.b16 %v838
    %v922 = vunpack.c.l.b16 %v839
    %v923 = vunpack.c.h.b16 %v839
    %v924 = vunpack.c.l.b16 %v840
    %v925 = vunpack.c.h.b16 %v840
    %v926 = vunpack.c.l.b16 %v841
    %v927 = vunpack.c.h.b16 %v841
    %v928 = vunpack.c.l.b16 %v842
    %v929 = vunpack.c.h.b16 %v842
    %v930 = vunpack.c.l.b16 %v843
    %v931 = vunpack.c.h.b16 %v843
    %v932 = vunpack.c.l.b16 %v844
    %v933 = vunpack.c.h.b16 %v844
    %v934 = vunpack.c.l.b16 %v845
    %v935 = vunpack.c.h.b16 %v845
    %v936 = vunpack.c.l.b16 %v846
    %v937 = vunpack.c.h.b16 %v846
    %v938 = vunpack.c.l.b16 %v847
    %v939 = vunpack.c.h.b16 %v847
    %v940 = vunpack.c.l.b16 %v848
    %v941 = vunpack.c.h.b16 %v848
    %v942 = vunpack.c.l.b16 %v849
    %v943 = vunpack.c.h.b16 %v849
    %v944 = vunpack.c.l.b16 %v850
    %v945 = vunpack.c.h.b16 %v850
    %v946 = vunpack.c.l.b16 %v851
    %v947 = vunpack.c.h.b16 %v851
    %v948 = vpack.c.b16 %v888, %v884
    %v949 = vpack.c.b16 %v889, %v885
    %v950 = vpack.c.b16 %v890, %v886
    %v951 = vpack.c.b16 %v891, %v887
    %v952 = vpack.c.b16 %v896, %v892
    %v953 = vpack.c.b16 %v897, %v893
    %v954 = vpack.c.b16 %v898, %v894
    %v955 = vpack.c.b16 %v899, %v895
    %v956 = vpack.c.b16 %v904, %v900
    %v957 = vpack.c.b16 %v905, %v901
    %v958 = vpack.c.b16 %v906, %v902
    %v959 = vpack.c.b16 %v907, %v903
    %v960 = vpack.c.b16 %v912, %v908
    %v961 = vpack.c.b16 %v913, %v909
    %v962 = vpack.c.b16 %v914, %v910
    %v963 = vpack.c.b16 %v915, %v911
    %v964 = vpack.c.b16 %v920, %v916
    %v965 = vpack.c.b16 %v921, %v917
    %v966 = vpack.c.b16 %v922, %v918
    %v967 = vpack.c.b16 %v923, %v919
    %v968 = vpack.c.b16 %v928, %v924
    %v969 = vpack.c.b16 %v929, %v925
    %v970 = vpack.c.b16 %v930, %v926
    %v971 = vpack.c.b16 %v931, %v927
    %v972 = vpack.c.b16 %v936, %v932
    %v973 = vpack.c.b16 %v937, %v933
    %v974 = vpack.c.b16 %v938, %v934
    %v975 = vpack.c.b16 %v939, %v935
    %v976 = vpack.c.b16 %v944, %v940
    %v977 = vpack.c.b16 %v945, %v941
    %v978 = vpack.c.b16 %v946, %v942
    %v979 = vpack.c.b16 %v947, %v943
    %1012 = vmatprep.subr.bf16.mxu0 %v949
    %1013 = vmatpush1.bf16.msra.mxu0 %v948
    %1014 = vmatprep.subr.bf16.mxu0 %v953
    %1015 = vmatpush1.bf16.msra.mxu0 %v952
    %1016 = vmatprep.subr.bf16.mxu0 %v957
    %1017 = vmatpush1.bf16.msra.mxu0 %v956
    %1018 = vmatprep.subr.bf16.mxu0 %v961
    %1019 = vmatpush1.bf16.msra.mxu0 %v960
    %1020 = vmatprep.subr.bf16.mxu0 %v965
    %1021 = vmatpush1.bf16.msra.mxu0 %v964
    %1022 = vmatprep.subr.bf16.mxu0 %v969
    %1023 = vmatpush1.bf16.msra.mxu0 %v968
    %1024 = vmatprep.subr.bf16.mxu0 %v973
    %1025 = vmatpush1.bf16.msra.mxu0 %v972
    %1026 = vmatprep.subr.bf16.mxu0 %v977
    %1027 = vmatpush1.bf16.msra.mxu0 %v976
    %1028 = vmatprep.subr.bf16.mxu0 0
    %1029 = vmatpush1.bf16.msra.mxu0 0
    %1030 = vmatprep.subr.bf16.mxu0 0
    %1031 = vmatpush1.bf16.msra.mxu0 0
    %1032 = vmatprep.subr.bf16.mxu0 0
    %1033 = vmatpush1.bf16.msra.mxu0 0
    %1034 = vmatprep.subr.bf16.mxu0 0
    %1035 = vmatpush1.bf16.msra.mxu0 0
    %1036 = vmatprep.subr.bf16.mxu0 0
    %1037 = vmatpush1.bf16.msra.mxu0 0
    %1038 = vmatprep.subr.bf16.mxu0 0
    %1039 = vmatpush1.bf16.msra.mxu0 0
    %1040 = vmatprep.subr.bf16.mxu0 0
    %1041 = vmatpush1.bf16.msra.mxu0 0
    %1042 = vmatprep.subr.bf16.mxu0 0
    %1043 = vmatpush1.bf16.msra.mxu0 0
    %1044 = vmatprep.mubr.bf16.mxu0 0
    %1045 = vmatmul.mubr.bf16.gmra.mrb[0].mxu0 %v818
    %v1046 = vpop.f32.mrb[0].mxu0
    %v1047 = vadd.f32 0.0, %v1046
    %v1048 = vpop.f32.mrb[0].mxu0
    %v1049 = vadd.f32 0.0, %v1048
    %v1050 = vpop.f32.mrb[0].mxu0
    %v1051 = vpop.f32.mrb[0].mxu0
    %1052 = vdwg.mxu0
    %1053 = vmatprep.subr.bf16.mxu0 %v951
    %1054 = vmatpush1.bf16.msra.mxu0 %v950
    %1055 = vmatprep.subr.bf16.mxu0 %v955
    %1056 = vmatpush1.bf16.msra.mxu0 %v954
    %1057 = vmatprep.subr.bf16.mxu0 %v959
    %1058 = vmatpush1.bf16.msra.mxu0 %v958
    %1059 = vmatprep.subr.bf16.mxu0 %v963
    %1060 = vmatpush1.bf16.msra.mxu0 %v962
    %1061 = vmatprep.subr.bf16.mxu0 %v967
    %1062 = vmatpush1.bf16.msra.mxu0 %v966
    %1063 = vmatprep.subr.bf16.mxu0 %v971
    %1064 = vmatpush1.bf16.msra.mxu0 %v970
    %1065 = vmatprep.subr.bf16.mxu0 %v975
    %1066 = vmatpush1.bf16.msra.mxu0 %v974
    %1067 = vmatprep.subr.bf16.mxu0 %v979
    %1068 = vmatpush1.bf16.msra.mxu0 %v978
    %1069 = vmatprep.subr.bf16.mxu0 0
    %1070 = vmatpush1.bf16.msra.mxu0 0
    %1071 = vmatprep.subr.bf16.mxu0 0
    %1072 = vmatpush1.bf16.msra.mxu0 0
    %1073 = vmatprep.subr.bf16.mxu0 0
    %1074 = vmatpush1.bf16.msra.mxu0 0
    %1075 = vmatprep.subr.bf16.mxu0 0
    %1076 = vmatpush1.bf16.msra.mxu0 0
    %1077 = vmatprep.subr.bf16.mxu0 0
    %1078 = vmatpush1.bf16.msra.mxu0 0
    %1079 = vmatprep.subr.bf16.mxu0 0
    %1080 = vmatpush1.bf16.msra.mxu0 0
    %1081 = vmatprep.subr.bf16.mxu0 0
    %1082 = vmatpush1.bf16.msra.mxu0 0
    %1083 = vmatprep.subr.bf16.mxu0 0
    %1084 = vmatpush1.bf16.msra.mxu0 0
    %1085 = vmatprep.mubr.bf16.mxu0 0
    %1086 = vmatmul.mubr.bf16.gmra.mrb[0].mxu0 %v818
    %v1087 = vpop.f32.mrb[0].mxu0
    %v1088 = vadd.f32 0.0, %v1087
    %v1089 = vpop.f32.mrb[0].mxu0
    %v1090 = vadd.f32 0.0, %v1089
    %v1091 = vpop.f32.mrb[0].mxu0
    %v1092 = vpop.f32.mrb[0].mxu0
    %1093 = vdwg.mxu0
    %v1126 = vunpack.c.l.b16 %v786
    %v1127 = vunpack.c.h.b16 %v786
    %v1128 = vunpack.c.l.b16 %v787
    %v1129 = vunpack.c.h.b16 %v787
    %v1130 = vunpack.c.l.b16 %v788
    %v1131 = vunpack.c.h.b16 %v788
    %v1132 = vunpack.c.l.b16 %v789
    %v1133 = vunpack.c.h.b16 %v789
    %v1134 = vunpack.c.l.b16 %v790
    %v1135 = vunpack.c.h.b16 %v790
    %v1136 = vunpack.c.l.b16 %v791
    %v1137 = vunpack.c.h.b16 %v791
    %v1138 = vunpack.c.l.b16 %v792
    %v1139 = vunpack.c.h.b16 %v792
    %v1140 = vunpack.c.l.b16 %v793
    %v1141 = vunpack.c.h.b16 %v793
    %v1142 = vunpack.c.l.b16 %v794
    %v1143 = vunpack.c.h.b16 %v794
    %v1144 = vunpack.c.l.b16 %v795
    %v1145 = vunpack.c.h.b16 %v795
    %v1146 = vunpack.c.l.b16 %v796
    %v1147 = vunpack.c.h.b16 %v796
    %v1148 = vunpack.c.l.b16 %v797
    %v1149 = vunpack.c.h.b16 %v797
    %v1150 = vunpack.c.l.b16 %v798
    %v1151 = vunpack.c.h.b16 %v798
    %v1152 = vunpack.c.l.b16 %v799
    %v1153 = vunpack.c.h.b16 %v799
    %v1154 = vunpack.c.l.b16 %v800
    %v1155 = vunpack.c.h.b16 %v800
    %v1156 = vunpack.c.l.b16 %v801
    %v1157 = vunpack.c.h.b16 %v801
    %v1158 = vunpack.c.l.b16 %v802
    %v1159 = vunpack.c.h.b16 %v802
    %v1160 = vunpack.c.l.b16 %v803
    %v1161 = vunpack.c.h.b16 %v803
    %v1162 = vunpack.c.l.b16 %v804
    %v1163 = vunpack.c.h.b16 %v804
    %v1164 = vunpack.c.l.b16 %v805
    %v1165 = vunpack.c.h.b16 %v805
    %v1166 = vunpack.c.l.b16 %v806
    %v1167 = vunpack.c.h.b16 %v806
    %v1168 = vunpack.c.l.b16 %v807
    %v1169 = vunpack.c.h.b16 %v807
    %v1170 = vunpack.c.l.b16 %v808
    %v1171 = vunpack.c.h.b16 %v808
    %v1172 = vunpack.c.l.b16 %v809
    %v1173 = vunpack.c.h.b16 %v809
    %v1174 = vunpack.c.l.b16 %v810
    %v1175 = vunpack.c.h.b16 %v810
    %v1176 = vunpack.c.l.b16 %v811
    %v1177 = vunpack.c.h.b16 %v811
    %v1178 = vunpack.c.l.b16 %v812
    %v1179 = vunpack.c.h.b16 %v812
    %v1180 = vunpack.c.l.b16 %v813
    %v1181 = vunpack.c.h.b16 %v813
    %v1182 = vunpack.c.l.b16 %v814
    %v1183 = vunpack.c.h.b16 %v814
    %v1184 = vunpack.c.l.b16 %v815
    %v1185 = vunpack.c.h.b16 %v815
    %v1186 = vunpack.c.l.b16 %v816
    %v1187 = vunpack.c.h.b16 %v816
    %v1188 = vunpack.c.l.b16 %v817
    %v1189 = vunpack.c.h.b16 %v817
    %v1190 = vpack.c.b16 %v1130, %v1126
    %v1191 = vpack.c.b16 %v1131, %v1127
    %v1192 = vpack.c.b16 %v1132, %v1128
    %v1193 = vpack.c.b16 %v1133, %v1129
    %v1194 = vpack.c.b16 %v1138, %v1134
    %v1195 = vpack.c.b16 %v1139, %v1135
    %v1196 = vpack.c.b16 %v1140, %v1136
    %v1197 = vpack.c.b16 %v1141, %v1137
    %v1198 = vpack.c.b16 %v1146, %v1142
    %v1199 = vpack.c.b16 %v1147, %v1143
    %v1200 = vpack.c.b16 %v1148, %v1144
    %v1201 = vpack.c.b16 %v1149, %v1145
    %v1202 = vpack.c.b16 %v1154, %v1150
    %v1203 = vpack.c.b16 %v1155, %v1151
    %v1204 = vpack.c.b16 %v1156, %v1152
    %v1205 = vpack.c.b16 %v1157, %v1153
    %v1206 = vpack.c.b16 %v1162, %v1158
    %v1207 = vpack.c.b16 %v1163, %v1159
    %v1208 = vpack.c.b16 %v1164, %v1160
    %v1209 = vpack.c.b16 %v1165, %v1161
    %v1210 = vpack.c.b16 %v1170, %v1166
    %v1211 = vpack.c.b16 %v1171, %v1167
    %v1212 = vpack.c.b16 %v1172, %v1168
    %v1213 = vpack.c.b16 %v1173, %v1169
    %v1214 = vpack.c.b16 %v1178, %v1174
    %v1215 = vpack.c.b16 %v1179, %v1175
    %v1216 = vpack.c.b16 %v1180, %v1176
    %v1217 = vpack.c.b16 %v1181, %v1177
    %v1218 = vpack.c.b16 %v1186, %v1182
    %v1219 = vpack.c.b16 %v1187, %v1183
    %v1220 = vpack.c.b16 %v1188, %v1184
    %v1221 = vpack.c.b16 %v1189, %v1185
    %1254 = vmatprep.subr.bf16.mxu0 %v1191
    %1255 = vmatpush1.bf16.msra.mxu0 %v1190
    %1256 = vmatprep.subr.bf16.mxu0 %v1195
    %1257 = vmatpush1.bf16.msra.mxu0 %v1194
    %1258 = vmatprep.subr.bf16.mxu0 %v1199
    %1259 = vmatpush1.bf16.msra.mxu0 %v1198
    %1260 = vmatprep.subr.bf16.mxu0 %v1203
    %1261 = vmatpush1.bf16.msra.mxu0 %v1202
    %1262 = vmatprep.subr.bf16.mxu0 %v1207
    %1263 = vmatpush1.bf16.msra.mxu0 %v1206
    %1264 = vmatprep.subr.bf16.mxu0 %v1211
    %1265 = vmatpush1.bf16.msra.mxu0 %v1210
    %1266 = vmatprep.subr.bf16.mxu0 %v1215
    %1267 = vmatpush1.bf16.msra.mxu0 %v1214
    %1268 = vmatprep.subr.bf16.mxu0 %v1219
    %1269 = vmatpush1.bf16.msra.mxu0 %v1218
    %1270 = vmatprep.subr.bf16.mxu0 0
    %1271 = vmatpush1.bf16.msra.mxu0 0
    %1272 = vmatprep.subr.bf16.mxu0 0
    %1273 = vmatpush1.bf16.msra.mxu0 0
    %1274 = vmatprep.subr.bf16.mxu0 0
    %1275 = vmatpush1.bf16.msra.mxu0 0
    %1276 = vmatprep.subr.bf16.mxu0 0
    %1277 = vmatpush1.bf16.msra.mxu0 0
    %1278 = vmatprep.subr.bf16.mxu0 0
    %1279 = vmatpush1.bf16.msra.mxu0 0
    %1280 = vmatprep.subr.bf16.mxu0 0
    %1281 = vmatpush1.bf16.msra.mxu0 0
    %1282 = vmatprep.subr.bf16.mxu0 0
    %1283 = vmatpush1.bf16.msra.mxu0 0
    %1284 = vmatprep.subr.bf16.mxu0 0
    %1285 = vmatpush1.bf16.msra.mxu0 0
    %1286 = vmatprep.mubr.bf16.mxu0 0
    %1287 = vmatmul.mubr.bf16.gmra.mrb[0].mxu0 %v780
    %v1288 = vpop.f32.mrb[0].mxu0
    %v1289 = vadd.f32 %v1047, %v1288
    %v1290 = vpop.f32.mrb[0].mxu0
    %v1291 = vadd.f32 %v1049, %v1290
    %v1292 = vpop.f32.mrb[0].mxu0
    %v1293 = vpop.f32.mrb[0].mxu0
    %1294 = vdwg.mxu0
    %1295 = vmatprep.subr.bf16.mxu0 %v1193
    %1296 = vmatpush1.bf16.msra.mxu0 %v1192
    %1297 = vmatprep.subr.bf16.mxu0 %v1197
    %1298 = vmatpush1.bf16.msra.mxu0 %v1196
    %1299 = vmatprep.subr.bf16.mxu0 %v1201
    %1300 = vmatpush1.bf16.msra.mxu0 %v1200
    %1301 = vmatprep.subr.bf16.mxu0 %v1205
    %1302 = vmatpush1.bf16.msra.mxu0 %v1204
    %1303 = vmatprep.subr.bf16.mxu0 %v1209
    %1304 = vmatpush1.bf16.msra.mxu0 %v1208
    %1305 = vmatprep.subr.bf16.mxu0 %v1213
    %1306 = vmatpush1.bf16.msra.mxu0 %v1212
    %1307 = vmatprep.subr.bf16.mxu0 %v1217
    %1308 = vmatpush1.bf16.msra.mxu0 %v1216
    %1309 = vmatprep.subr.bf16.mxu0 %v1221
    %1310 = vmatpush1.bf16.msra.mxu0 %v1220
    %1311 = vmatprep.subr.bf16.mxu0 0
    %1312 = vmatpush1.bf16.msra.mxu0 0
    %1313 = vmatprep.subr.bf16.mxu0 0
    %1314 = vmatpush1.bf16.msra.mxu0 0
    %1315 = vmatprep.subr.bf16.mxu0 0
    %1316 = vmatpush1.bf16.msra.mxu0 0
    %1317 = vmatprep.subr.bf16.mxu0 0
    %1318 = vmatpush1.bf16.msra.mxu0 0
    %1319 = vmatprep.subr.bf16.mxu0 0
    %1320 = vmatpush1.bf16.msra.mxu0 0
    %1321 = vmatprep.subr.bf16.mxu0 0
    %1322 = vmatpush1.bf16.msra.mxu0 0
    %1323 = vmatprep.subr.bf16.mxu0 0
    %1324 = vmatpush1.bf16.msra.mxu0 0
    %1325 = vmatprep.subr.bf16.mxu0 0
    %1326 = vmatpush1.bf16.msra.mxu0 0
    %1327 = vmatprep.mubr.bf16.mxu0 0
    %1328 = vmatmul.mubr.bf16.gmra.mrb[0].mxu0 %v780
    %v1329 = vpop.f32.mrb[0].mxu0
    %v1330 = vadd.f32 %v1088, %v1329
    %v1331 = vpop.f32.mrb[0].mxu0
    %v1332 = vadd.f32 %v1090, %v1331
    %v1333 = vpop.f32.mrb[0].mxu0
    %v1334 = vpop.f32.mrb[0].mxu0
    %1335 = vdwg.mxu0
    %s1336 = scalar_lea.vmem [#allocation16], 4
    %v1337 = vld [vmem:[%s1336] sm:$0xf]
    %v1339 = vlaneseq
    %v1340 = vshrl.u32 %v1339, 7
    %v1341 = vsub.s32 0, %v1340
    %v1342 = vrot.slane %v1337, %v1341
    %v1343 = vlaneseq
    %v1344 = vshrl.u32 %v1343, 7
    %v1345 = vsub.s32 1, %v1344
    %v1346 = vrot.slane %v1337, %v1345
    %v1347 = vlaneseq
    %v1348 = vshrl.u32 %v1347, 7
    %v1349 = vsub.s32 2, %v1348
    %v1350 = vrot.slane %v1337, %v1349
    %v1351 = vlaneseq
    %v1352 = vshrl.u32 %v1351, 7
    %v1353 = vsub.s32 3, %v1352
    %v1354 = vrot.slane %v1337, %v1353
    %v1359 = vadd.f32 %v1289, %v1342
    %v1360 = vadd.f32 %v1291, %v1346
    %v1361 = vadd.f32 %v1330, %v1350
    %v1362 = vadd.f32 %v1332, %v1354
    %v1363 = vxor.u32 %v1359, 2147483648
    %v1364 = vxor.u32 %v1360, 2147483648
    %v1365 = vxor.u32 %v1362, 2147483648
    %v1366 = vmul.f32 %v1363, 1.442695
    %v1367 = vpow.pop %v1366
    %v1368 = vmul.f32 %v1364, 1.442695
    %v1369 = vpow.pop %v1368
    %v1370 = vmul.f32 %v1365, 1.442695
    %v1371 = vpow.pop %v1370
    %v1372 = vadd.f32 %v1367, 1.0
    %v1373 = vadd.f32 %v1369, 1.0
    %v1374 = vadd.f32 %v1371, 1.0
    %v1375 = vrcp.pop %v1372
    %v1376 = vmul.f32 1.0, %v1375
    %v1377 = vrcp.pop %v1373
    %v1378 = vmul.f32 1.0, %v1377
    %v1379 = vrcp.pop %v1374
    %v1380 = vmul.f32 1.0, %v1379
    %v1381 = vtanh.pop %v1361
    %v1382 = vmul.f32 %v1378, %v784
    %v1383 = vmul.f32 %v1376, %v1381
    %v1384 = vadd.f32 %v1382, %v1383
    %v1385 = vtanh.pop %v1384
    %v1386 = vmul.f32 %v1380, %v1385
    %s1387 = scalar_lea.vmem [#allocation18], 8
    %1388 = vst [vmem:[%s1387] sm:$0xff] %v1386
    %s1389 = scalar_lea.vmem [#allocation20], 8
    %1390 = vst [vmem:[%s1389] sm:$0xff] %v1384
    %v1391 = vpack.c.bf16 %v1386, %v1386
    %s1392 = smul.u32 4, 16
    %s1393 = smul.u32 %s1392, 1
    %s1394 = sshll.u32 %s1393, 4
    %1395 = dma.done [#allocation5], %s1394
    %v1396 = vld [vmem:[#allocation4] sm:$0xff]
    %v1397 = vld [vmem:[#allocation4 + $0x8] sm:$0xff]
    %v1398 = vld [vmem:[#allocation4 + $0x10] sm:$0xff]
    %v1399 = vld [vmem:[#allocation4 + $0x18] sm:$0xff]
    %v1400 = vld [vmem:[#allocation4 + $0x20] sm:$0xff]
    %v1401 = vld [vmem:[#allocation4 + $0x28] sm:$0xff]
    %v1402 = vld [vmem:[#allocation4 + $0x30] sm:$0xff]
    %v1403 = vld [vmem:[#allocation4 + $0x38] sm:$0xff]
    %v1404 = vld [vmem:[%s6] sm:$0x1]
    %v1406 = vlaneseq
    %v1407 = vshrl.u32 %v1406, 7
    %v1408 = vsub.s32 0, %v1407
    %v1409 = vrot.slane %v1404, %v1408
    %1411 = vmatprep.subr.bf16.mxu0 0
    %1412 = vmatpush1.bf16.msra.mxu0 %v1396
    %1413 = vmatprep.subr.bf16.mxu0 0
    %1414 = vmatpush1.bf16.msra.mxu0 %v1397
    %1415 = vmatprep.subr.bf16.mxu0 0
    %1416 = vmatpush1.bf16.msra.mxu0 %v1398
    %1417 = vmatprep.subr.bf16.mxu0 0
    %1418 = vmatpush1.bf16.msra.mxu0 %v1399
    %1419 = vmatprep.subr.bf16.mxu0 0
    %1420 = vmatpush1.bf16.msra.mxu0 %v1400
    %1421 = vmatprep.subr.bf16.mxu0 0
    %1422 = vmatpush1.bf16.msra.mxu0 %v1401
    %1423 = vmatprep.subr.bf16.mxu0 0
    %1424 = vmatpush1.bf16.msra.mxu0 %v1402
    %1425 = vmatprep.subr.bf16.mxu0 0
    %1426 = vmatpush1.bf16.msra.mxu0 %v1403
    %1427 = vmatprep.subr.bf16.mxu0 0
    %1428 = vmatpush1.bf16.msra.mxu0 0
    %1429 = vmatprep.subr.bf16.mxu0 0
    %1430 = vmatpush1.bf16.msra.mxu0 0
    %1431 = vmatprep.subr.bf16.mxu0 0
    %1432 = vmatpush1.bf16.msra.mxu0 0
    %1433 = vmatprep.subr.bf16.mxu0 0
    %1434 = vmatpush1.bf16.msra.mxu0 0
    %1435 = vmatprep.subr.bf16.mxu0 0
    %1436 = vmatpush1.bf16.msra.mxu0 0
    %1437 = vmatprep.subr.bf16.mxu0 0
    %1438 = vmatpush1.bf16.msra.mxu0 0
    %1439 = vmatprep.subr.bf16.mxu0 0
    %1440 = vmatpush1.bf16.msra.mxu0 0
    %1441 = vmatprep.subr.bf16.mxu0 0
    %1442 = vmatpush1.bf16.msra.mxu0 0
    %1443 = vmatprep.mubr.bf16.mxu0 0
    %1444 = vmatmul.mubr.bf16.gmra.mrb[0].mxu0 %v1391
    %v1445 = vpop.f32.mrb[0].mxu0
    %v1446 = vadd.f32 %v1409, %v1445
    %v1447 = vpop.f32.mrb[0].mxu0
    %v1448 = vpop.f32.mrb[0].mxu0
    %v1449 = vpop.f32.mrb[0].mxu0
    %1450 = vdwg.mxu0
    %1451 = vmax.xlane.f32.xlu0 %v1446
    %v1452 = vpop.xlane.xlu0 %1451
    %v1453 = vsub.f32 %v1446, %v1452
    %v1454 = vmul.f32 %v1453, 1.442695
    %v1455 = vpow.pop %v1454
    %1456 = vadd.xlane.f32.xlu0 %v1455
    %v1457 = vpop.xlane.xlu0 %1456
    %v1458 = vlog2.pop %v1457
    %v1459 = vmul.f32 %v1458, 0.6931472
    %v1460 = vsub.f32 %v1453, %v1459
    %1461 = vst [vmem:[#allocation17] sm:$0xff] %v1460
    // Predicated region
    $region120: #{tpu_custom_call.1} parent=1 // pred_check
      _
    $region121: #{tpu_custom_call.1} parent=1 // pred_check_branch
      %1463 = sbr.rel (0) target = $region123
    $region122: #{tpu_custom_call.1} parent=1 // pred_region
      %s1465 = ssub.s32 128, 128
      %1466 = vsyncadd [#allocation8], %s1465
      %s1468 = sshll.u32 [#allocation17], 4
      %s1469 = int_to_ptr.vmem [resolvable:$true] %s1468
      %1471 = dma.vmem_to_hbm [thread:$0]  %s1469, 128, %s9, [#allocation8]
    $region123: #{tpu_custom_call.1} parent=1 // pred_fallthru
      _
    // Predicated region
    $region124: #{tpu_custom_call.1} parent=1 // pred_check
      _
    $region125: #{tpu_custom_call.1} parent=1 // pred_check_branch
      %1473 = sbr.rel (0) target = $region127
    $region126: #{tpu_custom_call.1} parent=1 // pred_region
      %s1475 = ssub.s32 256, 256
      %1476 = vsyncadd [#allocation19], %s1475
      %s1477 = sshll.u32 [#allocation18], 4
      %s1478 = int_to_ptr.vmem [resolvable:$true] %s1477
      %1483 = dma.vmem_to_hbm [thread:$0]  %s1478, 256, %s10, [#allocation19], 128, 128, 8
    $region127: #{tpu_custom_call.1} parent=1 // pred_fallthru
      _
    // Predicated region
    $region128: #{tpu_custom_call.1} parent=1 // pred_check
      _
    $region129: #{tpu_custom_call.1} parent=1 // pred_check_branch
      %1485 = sbr.rel (0) target = $region131
    $region130: #{tpu_custom_call.1} parent=1 // pred_region
      %s1487 = ssub.s32 256, 256
      %1488 = vsyncadd [#allocation19], %s1487
      %s1489 = sshll.u32 [#allocation20], 4
      %s1490 = int_to_ptr.vmem [resolvable:$true] %s1489
      %1495 = dma.vmem_to_hbm [thread:$0]  %s1490, 256, %s11, [#allocation19], 128, 128, 8
    $region131: #{tpu_custom_call.1} parent=1 // pred_fallthru
      _
    // Predicated region
    $region132: #{tpu_custom_call.1} parent=1 // pred_check
      _
    $region133: #{tpu_custom_call.1} parent=1 // pred_check_branch
      %1497 = sbr.rel (0) target = $region135
    $region134: #{tpu_custom_call.1} parent=1 // pred_region
      %1498 = dma.done [#allocation8], 128
    $region135: #{tpu_custom_call.1} parent=1 // pred_fallthru
      _
    // Predicated region
    $region136: #{tpu_custom_call.1} parent=1 // pred_check
      _
    $region137: #{tpu_custom_call.1} parent=1 // pred_check_branch
      %1500 = sbr.rel (0) target = $region139
    $region138: #{tpu_custom_call.1} parent=1 // pred_region
      %1501 = dma.done [#allocation19], 256
    $region139: #{tpu_custom_call.1} parent=1 // pred_fallthru
      _
    // Predicated region
    $region140: #{tpu_custom_call.1} parent=1 // pred_check
      _
    $region141: #{tpu_custom_call.1} parent=1 // pred_check_branch
      %1503 = sbr.rel (0) target = $region143
    $region142: #{tpu_custom_call.1} parent=1 // pred_region
      %1504 = dma.done [#allocation19], 256
    $region143: #{tpu_custom_call.1} parent=1 // pred_fallthru
      _
    %1505 = vsyncpa [#allocation7], 1
    %1506 = vsyncpa [#allocation12], 1
    %1507 = vsyncpa [#allocation15], 1
    %1508 = vsyncpa [#allocation8], 1
    %1509 = vsyncpa [#allocation19], 1
    %1510 = vsyncpa [#allocation9], 1
  %1511 = vsyncmov [#allocation3]
  %s1512 = vpop.sfrf %1511
  %p1513 = scmp.eq.s32.totalorder %s1512, 0
  %p1514 = pneg %p1513
  %1516 = shalt.err (%p1514)
  %s1517 = scalar_lea.sflag [#allocation3], 1
  %1518 = vsyncmov %s1517
  %s1519 = vpop.sfrf %1518
  %p1520 = scmp.eq.s32.totalorder %s1519, 0
  %p1521 = pneg %p1520
  %1523 = shalt.err (%p1521)
  %s1524 = scalar_lea.sflag [#allocation3], 2
  %1525 = vsyncmov %s1524
  %s1526 = vpop.sfrf %1525
  %p1527 = scmp.eq.s32.totalorder %s1526, 0
  %p1528 = pneg %p1527
  %1530 = shalt.err (%p1528)
  %s1531 = scalar_lea.sflag [#allocation3], 3
  %1532 = vsyncmov %s1531
  %s1533 = vpop.sfrf %1532
  %p1534 = scmp.eq.s32.totalorder %s1533, 0
  %p1535 = pneg %p1534
  %1537 = shalt.err (%p1535)
  %s1538 = scalar_lea.sflag [#allocation3], 4
  %1539 = vsyncmov %s1538
  %s1540 = vpop.sfrf %1539
  %p1541 = scmp.eq.s32.totalorder %s1540, 0
  %p1542 = pneg %p1541
  %1544 = shalt.err (%p1542)
  %s1545 = scalar_lea.sflag [#allocation3], 5
  %1546 = vsyncmov %s1545
  %s1547 = vpop.sfrf %1546
  %p1548 = scmp.eq.s32.totalorder %s1547, 0
  %p1549 = pneg %p1548
  %1551 = shalt.err (%p1549)
  %s1552 = scalar_lea.sflag [#allocation3], 6
  %1553 = vsyncmov %s1552
  %s1554 = vpop.sfrf %1553
  %p1555 = scmp.eq.s32.totalorder %s1554, 0
  %p1556 = pneg %p1555
  %1558 = shalt.err (%p1556)
  %s1559 = scalar_lea.sflag [#allocation3], 7
  %1560 = vsyncmov %s1559
  %s1561 = vpop.sfrf %1560
  %p1562 = scmp.eq.s32.totalorder %s1561, 0
  %p1563 = pneg %p1562
  %1565 = shalt.err (%p1563)
  %1566 = vsyncmov [#allocation5]
  %s1567 = vpop.sfrf %1566
  %p1568 = scmp.eq.s32.totalorder %s1567, 0
  %p1569 = pneg %p1568
  %1571 = shalt.err (%p1569)

</llo_original>
